<compile_context>
chip_gen: v7x
topology: tpu7x:2x2x1
jax: 0.10.0
libtpu: 0.0.40
codegen_flags: <defaults>
</compile_context>

<pallas_src>
import functools

import jax
import jax.numpy as jnp
from jax.experimental import pallas as pl
from jax.experimental.pallas import tpu as pltpu


# ---------------------------------------------------------------------------
# Fused Pallas kernel: one grid step per batch sample.
# ---------------------------------------------------------------------------

def _policy_fwd_kernel(patches_ref, wconv_ref, bconv_ref, wfc_ref, bfc_ref,
                       whead_ref, bhead_ref, out_ref):
    # patches_ref: (1, KKC, HW)        im2col'd input for this sample.
    # wconv_ref:   (Cout, KKC)         conv weight, flattened + transposed.
    # bconv_ref:   (Cout, 1)
    # wfc_ref:     (Cout, HW, hidden)  FC weight in NCHW-flatten order (bf16).
    # bfc_ref:     (1, hidden)
    # whead_ref:   (hidden, P)         [actor | critic] heads, lane-padded to P.
    # bhead_ref:   (1, P)
    # out_ref:     (1, 1, P)           lane-dense padded output row.
    cout = wconv_ref.shape[0]

    # Conv3x3 'same' as ONE im2col matmul: (Cout, KKC) @ (KKC, HW) -> (Cout, HW).
    conv = jnp.dot(wconv_ref[...], patches_ref[0],
                   preferred_element_type=jnp.float32)
    conv = jnp.maximum(conv + bconv_ref[...], 0.0)          # bias (Cout,1) bcast

    # FC over the NCHW-flattened conv activations WITHOUT materializing the
    # flatten (avoids a lane-changing in-kernel reshape):
    #   h[j] = sum_c conv[c, :] @ fc_w[c*HW:(c+1)*HW, j]
    # Static unroll over Cout keeps every dot a plain 2-D MXU matmul (K = HW).
    h = jnp.zeros((1, bfc_ref.shape[1]), jnp.float32)
    for c in range(cout):
        h = h + jnp.dot(conv[c:c + 1, :].astype(wfc_ref.dtype), wfc_ref[c],
                        preferred_element_type=jnp.float32)
    h = jnp.maximum(h + bfc_ref[...], 0.0)                  # (1, hidden)

    # Fused actor/critic heads -> single lane-dense (1, P) store.
    out = jnp.dot(h, whead_ref[...], preferred_element_type=jnp.float32)
    out = out + bhead_ref[...]
    out_ref[...] = out[None].astype(out_ref.dtype)


def _policy_forward_pallas(patches, wconvT, bconv, wfc3, bfc, whead, bhead):
    N, KKC, HW = patches.shape
    Cout = wconvT.shape[0]
    hidden = wfc3.shape[2]
    P = whead.shape[1]
    out = pl.pallas_call(
        _policy_fwd_kernel,
        out_shape=jax.ShapeDtypeStruct((N, 1, P), jnp.float32),
        grid=(N,),
        in_specs=[
            pl.BlockSpec((1, KKC, HW), lambda n: (n, 0, 0)),
            pl.BlockSpec((Cout, KKC), lambda n: (0, 0)),
            pl.BlockSpec((Cout, 1), lambda n: (0, 0)),
            pl.BlockSpec((Cout, HW, hidden), lambda n: (0, 0, 0)),
            pl.BlockSpec((1, hidden), lambda n: (0, 0)),
            pl.BlockSpec((hidden, P), lambda n: (0, 0)),
            pl.BlockSpec((1, P), lambda n: (0, 0)),
        ],
        out_specs=pl.BlockSpec((1, 1, P), lambda n: (n, 0, 0)),
        compiler_params=pltpu.CompilerParams(
            dimension_semantics=("parallel",)),   # batch shards across TCs (v7x)
    )(patches, wconvT, bconv, wfc3, bfc, whead, bhead)
    return out[:, 0, :]


# ---------------------------------------------------------------------------
# Wrapper-side layout plumbing (pure JAX, fused by XLA into one prologue op).
# ---------------------------------------------------------------------------

def _im2col_nchw(x_nchw, ksize):
    """NCHW -> (N, ksize*ksize*Cin, H*W) patches for 'same' conv, stride 1."""
    N, C, H, W = x_nchw.shape
    pad = ksize // 2
    xp = jnp.pad(x_nchw, ((0, 0), (0, 0), (pad, pad), (pad, pad)))
    taps = []
    for kh in range(ksize):
        for kw in range(ksize):
            taps.append(xp[:, :, kh:kh + H, kw:kw + W].reshape(N, C, H * W))
    # (N, K*K, C, HW) -> (N, K*K*C, HW); row index = (kh*K+kw)*C + c, matching
    # the flattened conv weight ordering.
    return jnp.stack(taps, axis=1).reshape(N, ksize * ksize * C, H * W)


@functools.partial(jax.jit, static_argnames=("ksize", "num_actions"))
def _policy_forward(x_nchw, kparams, *, ksize, num_actions):
    patches = _im2col_nchw(x_nchw.astype(jnp.float32), ksize)
    out = _policy_forward_pallas(patches,
                                 kparams["wconvT"], kparams["bconv"],
                                 kparams["wfc3"], kparams["bfc"],
                                 kparams["whead"], kparams["bhead"])
    logits = out[:, :num_actions]
    value = out[:, num_actions:num_actions + 1]
    return logits, value


# ---------------------------------------------------------------------------
# Inner policy module (the `module` DistModule wraps) and DistModule.
# ---------------------------------------------------------------------------

class SimplePolicyNet:
    """Small actor-critic CNN policy; the hot path is the fused Pallas kernel."""

    def __init__(self, key, *, in_ch=4, conv_ch=8, ksize=3, H=16, W=16,
                 hidden=32, num_actions=10):
        self.in_ch, self.conv_ch, self.ksize = in_ch, conv_ch, ksize
        self.H, self.W = H, W
        self.hidden, self.num_actions = hidden, num_actions
        k = jax.random.split(key, 6)
        flat = conv_ch * H * W
        s = 0.05
        self.params = {
            "conv_w": s * jax.random.normal(k[0], (ksize, ksize, in_ch, conv_ch), jnp.float32),
            "conv_b": s * jax.random.normal(k[1], (1, conv_ch), jnp.float32),
            "fc_w":   s * jax.random.normal(k[2], (flat, hidden), jnp.float32),
            "fc_b":   s * jax.random.normal(k[3], (1, hidden), jnp.float32),
            "actor_w": s * jax.random.normal(k[4], (hidden, num_actions), jnp.float32),
            "actor_b": jnp.zeros((1, num_actions), jnp.float32),
            "critic_w": s * jax.random.normal(k[5], (hidden, 1), jnp.float32),
            "critic_b": jnp.zeros((1, 1), jnp.float32),
        }
        self._kparams = self._derive_kernel_params()

    def _derive_kernel_params(self):
        p = self.params
        K, Cin, Cout = self.ksize, self.in_ch, self.conv_ch
        A = self.num_actions
        P = ((A + 1 + 127) // 128) * 128     # lane-dense padded head width
        head_w = jnp.concatenate([p["actor_w"], p["critic_w"]], axis=1)
        head_b = jnp.concatenate([p["actor_b"], p["critic_b"]], axis=1)
        return {
            # (Cout, K*K*Cin): column index = (kh*K+kw)*Cin + c, matches im2col.
            "wconvT": p["conv_w"].reshape(K * K * Cin, Cout).T,
            "bconv":  p["conv_b"].reshape(Cout, 1),
            # FC weight in torch NCHW-flatten order, split (Cout, H*W, hidden), bf16.
            "wfc3":   p["fc_w"].reshape(Cout, self.H * self.W, self.hidden)
                               .astype(jnp.bfloat16),
            "bfc":    p["fc_b"],
            "whead":  jnp.pad(head_w, ((0, 0), (0, P - (A + 1)))),
            "bhead":  jnp.pad(head_b, ((0, 0), (0, P - (A + 1)))),
        }

    def state_dict(self):
        return self.params

    def __call__(self, x_nchw):
        return _policy_forward(x_nchw, self._kparams,
                               ksize=self.ksize, num_actions=self.num_actions)


def broadcast_params(module):
    """Single-device stand-in for torch.distributed broadcast from rank 0."""
    # TODO(synk): torch.distributed.broadcast has no single-device Pallas
    # equivalent; broadcast-from-rank-0 on one device is the identity.
    for _ in module.state_dict().values():
        pass


class DistModule:
    """JAX/Pallas port of DistModule: init broadcasts params, forward delegates."""

    def __init__(self, module):
        self.module = module
        broadcast_params(self.module)
        # dist._clear_group_cache() -> no-op on a single device.
        self._rng = jax.random.PRNGKey(1)

    def __call__(self, *inputs, **kwargs):
        return self.forward(*inputs, **kwargs)

    def forward(self, *inputs, **kwargs):
        return self.module(*inputs, **kwargs)

    def train(self, mode=True):
        return self

    def act(self, inputs, deterministic: bool):
        logits, value = self.module(inputs)
        if deterministic:
            action = jnp.argmax(logits, axis=-1)
        else:
            self._rng, k = jax.random.split(self._rng)
            action = jax.random.categorical(k, logits, axis=-1)
        return action, value

    def evaluate_actions(self, inputs, actions):
        logits, value = self.module(inputs)
        logp = jax.nn.log_softmax(logits, axis=-1)
        action_logp = jnp.take_along_axis(logp, actions[:, None], axis=-1)
        return action_logp, value


# ---------------------------------------------------------------------------
# Pure-JAX reference (for a sanity tolerance check against the kernel).
# ---------------------------------------------------------------------------

def _reference_forward(x_nchw, params):
    N = x_nchw.shape[0]
    conv = jax.lax.conv_general_dilated(
        x_nchw.astype(jnp.float32), params["conv_w"],
        window_strides=(1, 1), padding="SAME",
        dimension_numbers=("NCHW", "HWIO", "NCHW"))
    conv = jnp.maximum(conv + params["conv_b"].reshape(1, -1, 1, 1), 0.0)
    feat = conv.reshape(N, -1)                                   # torch view(N,-1)
    h = jnp.maximum(feat @ params["fc_w"] + params["fc_b"], 0.0)
    logits = h @ params["actor_w"] + params["actor_b"]
    value = h @ params["critic_w"] + params["critic_b"]
    return logits, value


# ---------------------------------------------------------------------------
# Main
# ---------------------------------------------------------------------------

if __name__ == "__main__":
    root = jax.random.PRNGKey(0)
    k_params, k_input = jax.random.split(root)

    inner = SimplePolicyNet(k_params, in_ch=4, conv_ch=8, ksize=3,
                            H=16, W=16, hidden=32, num_actions=10)
    model = DistModule(inner)

    x = jax.random.normal(k_input, (2, 4, 16, 16), jnp.float32)  # NCHW like PyTorch

    logits, value = model(x)
    jax.block_until_ready((logits, value))
    assert logits.shape == (2, 10) and value.shape == (2, 1)

    # Sanity check vs. f32 reference (loose tol: fc weight/activations are bf16).
    ref_logits, ref_value = _reference_forward(x, inner.params)
    max_err = float(jnp.maximum(jnp.max(jnp.abs(logits - ref_logits)),
                                jnp.max(jnp.abs(value - ref_value))))
    assert max_err < 5e-2, f"kernel mismatch vs reference: {max_err}"

    print("KERNEL_OK")
</pallas_src>

<mosaic_0001>
module attributes {stable_mosaic.version = 11 : i64} {
  func.func @_policy_fwd_kernel(%arg0: i32, %arg1: memref<1x36x256xf32, #tpu.memory_space<vmem>>, %arg2: memref<8x36xf32, #tpu.memory_space<vmem>>, %arg3: memref<8x1xf32, #tpu.memory_space<vmem>>, %arg4: memref<8x256x32xbf16, #tpu.memory_space<vmem>>, %arg5: memref<1x32xf32, #tpu.memory_space<vmem>>, %arg6: memref<32x128xf32, #tpu.memory_space<vmem>>, %arg7: memref<1x128xf32, #tpu.memory_space<vmem>>, %arg8: memref<1x1x128xf32, #tpu.memory_space<vmem>>) attributes {dimension_semantics = [#tpu.dimension_semantics<parallel>], iteration_bounds = array<i64: 2>, scalar_prefetch = 0 : i64, scratch_operands = 0 : i64, tpu.core_type = #tpu.core_type<tc>, window_params = [{transform_indices = @transform_0, window_bounds = array<i64: 1, 36, 256>}, {pipeline_mode = #tpu.pipeline_mode<synchronous>, transform_indices = @transform_1, window_bounds = array<i64: 8, 36>}, {pipeline_mode = #tpu.pipeline_mode<synchronous>, transform_indices = @transform_2, window_bounds = array<i64: 8, 1>}, {pipeline_mode = #tpu.pipeline_mode<synchronous>, transform_indices = @transform_3, window_bounds = array<i64: 8, 256, 32>}, {pipeline_mode = #tpu.pipeline_mode<synchronous>, transform_indices = @transform_4, window_bounds = array<i64: 1, 32>}, {pipeline_mode = #tpu.pipeline_mode<synchronous>, transform_indices = @transform_5, window_bounds = array<i64: 32, 128>}, {pipeline_mode = #tpu.pipeline_mode<synchronous>, transform_indices = @transform_6, window_bounds = array<i64: 1, 128>}, {transform_indices = @transform_7, window_bounds = array<i64: 1, 1, 128>}]} {
    %c0 = arith.constant 0 : index
    %c0_0 = arith.constant 0 : index
    %0 = vector.load %arg2[%c0, %c0_0] : memref<8x36xf32, #tpu.memory_space<vmem>>, vector<8x36xf32>
    %c0_1 = arith.constant 0 : index
    %c0_2 = arith.constant 0 : index
    %c0_3 = arith.constant 0 : index
    %1 = vector.load %arg1[%c0_1, %c0_2, %c0_3] : memref<1x36x256xf32, #tpu.memory_space<vmem>>, vector<1x36x256xf32>
    %2 = vector.shape_cast %1 : vector<1x36x256xf32> to vector<36x256xf32>
    %cst = arith.constant dense<0.000000e+00> : vector<8x256xf32>
    %3 = tpu.matmul %0, %2, %cst {dimension_numbers = #tpu.dot_dimension_numbers<[1], [0], [0], [1], [0, 0, 1, 1], [], []>} : vector<8x36xf32>, vector<36x256xf32>, vector<8x256xf32> -> vector<8x256xf32>
    %c0_4 = arith.constant 0 : index
    %c0_5 = arith.constant 0 : index
    %4 = vector.load %arg3[%c0_4, %c0_5] : memref<8x1xf32, #tpu.memory_space<vmem>>, vector<8x1xf32>
    %5 = vector.broadcast %4 : vector<8x1xf32> to vector<8x256xf32>
    %6 = arith.addf %3, %5 : vector<8x256xf32>
    %cst_6 = arith.constant 0.000000e+00 : f32
    %7 = vector.broadcast %cst_6 : f32 to vector<8x256xf32>
    %8 = arith.maximumf %6, %7 : vector<8x256xf32>
    %cst_7 = arith.constant 0.000000e+00 : f32
    %9 = vector.broadcast %cst_7 : f32 to vector<1x32xf32>
    %10 = vector.extract_strided_slice %8 {offsets = [0, 0], sizes = [1, 256], strides = [1, 1]} : vector<8x256xf32> to vector<1x256xf32>
    %11 = arith.truncf %10 : vector<1x256xf32> to vector<1x256xbf16>
    %c0_8 = arith.constant 0 : index
    %c0_9 = arith.constant 0 : index
    %c0_10 = arith.constant 0 : index
    %12 = vector.load %arg4[%c0_8, %c0_9, %c0_10] : memref<8x256x32xbf16, #tpu.memory_space<vmem>>, vector<1x256x32xbf16>
    %13 = vector.shape_cast %12 : vector<1x256x32xbf16> to vector<256x32xbf16>
    %cst_11 = arith.constant dense<0.000000e+00> : vector<1x32xf32>
    %14 = tpu.matmul %11, %13, %cst_11 {dimension_numbers = #tpu.dot_dimension_numbers<[1], [0], [0], [1], [0, 0, 1, 1], [], []>} : vector<1x256xbf16>, vector<256x32xbf16>, vector<1x32xf32> -> vector<1x32xf32>
    %15 = arith.addf %9, %14 : vector<1x32xf32>
    %16 = vector.extract_strided_slice %8 {offsets = [1, 0], sizes = [1, 256], strides = [1, 1]} : vector<8x256xf32> to vector<1x256xf32>
    %17 = arith.truncf %16 : vector<1x256xf32> to vector<1x256xbf16>
    %c1 = arith.constant 1 : index
    %c0_12 = arith.constant 0 : index
    %c0_13 = arith.constant 0 : index
    %18 = vector.load %arg4[%c1, %c0_12, %c0_13] : memref<8x256x32xbf16, #tpu.memory_space<vmem>>, vector<1x256x32xbf16>
    %19 = vector.shape_cast %18 : vector<1x256x32xbf16> to vector<256x32xbf16>
    %cst_14 = arith.constant dense<0.000000e+00> : vector<1x32xf32>
    %20 = tpu.matmul %17, %19, %cst_14 {dimension_numbers = #tpu.dot_dimension_numbers<[1], [0], [0], [1], [0, 0, 1, 1], [], []>} : vector<1x256xbf16>, vector<256x32xbf16>, vector<1x32xf32> -> vector<1x32xf32>
    %21 = arith.addf %15, %20 : vector<1x32xf32>
    %22 = vector.extract_strided_slice %8 {offsets = [2, 0], sizes = [1, 256], strides = [1, 1]} : vector<8x256xf32> to vector<1x256xf32>
    %23 = arith.truncf %22 : vector<1x256xf32> to vector<1x256xbf16>
    %c2 = arith.constant 2 : index
    %c0_15 = arith.constant 0 : index
    %c0_16 = arith.constant 0 : index
    %24 = vector.load %arg4[%c2, %c0_15, %c0_16] : memref<8x256x32xbf16, #tpu.memory_space<vmem>>, vector<1x256x32xbf16>
    %25 = vector.shape_cast %24 : vector<1x256x32xbf16> to vector<256x32xbf16>
    %cst_17 = arith.constant dense<0.000000e+00> : vector<1x32xf32>
    %26 = tpu.matmul %23, %25, %cst_17 {dimension_numbers = #tpu.dot_dimension_numbers<[1], [0], [0], [1], [0, 0, 1, 1], [], []>} : vector<1x256xbf16>, vector<256x32xbf16>, vector<1x32xf32> -> vector<1x32xf32>
    %27 = arith.addf %21, %26 : vector<1x32xf32>
    %28 = vector.extract_strided_slice %8 {offsets = [3, 0], sizes = [1, 256], strides = [1, 1]} : vector<8x256xf32> to vector<1x256xf32>
    %29 = arith.truncf %28 : vector<1x256xf32> to vector<1x256xbf16>
    %c3 = arith.constant 3 : index
    %c0_18 = arith.constant 0 : index
    %c0_19 = arith.constant 0 : index
    %30 = vector.load %arg4[%c3, %c0_18, %c0_19] : memref<8x256x32xbf16, #tpu.memory_space<vmem>>, vector<1x256x32xbf16>
    %31 = vector.shape_cast %30 : vector<1x256x32xbf16> to vector<256x32xbf16>
    %cst_20 = arith.constant dense<0.000000e+00> : vector<1x32xf32>
    %32 = tpu.matmul %29, %31, %cst_20 {dimension_numbers = #tpu.dot_dimension_numbers<[1], [0], [0], [1], [0, 0, 1, 1], [], []>} : vector<1x256xbf16>, vector<256x32xbf16>, vector<1x32xf32> -> vector<1x32xf32>
    %33 = arith.addf %27, %32 : vector<1x32xf32>
    %34 = vector.extract_strided_slice %8 {offsets = [4, 0], sizes = [1, 256], strides = [1, 1]} : vector<8x256xf32> to vector<1x256xf32>
    %35 = arith.truncf %34 : vector<1x256xf32> to vector<1x256xbf16>
    %c4 = arith.constant 4 : index
    %c0_21 = arith.constant 0 : index
    %c0_22 = arith.constant 0 : index
    %36 = vector.load %arg4[%c4, %c0_21, %c0_22] : memref<8x256x32xbf16, #tpu.memory_space<vmem>>, vector<1x256x32xbf16>
    %37 = vector.shape_cast %36 : vector<1x256x32xbf16> to vector<256x32xbf16>
    %cst_23 = arith.constant dense<0.000000e+00> : vector<1x32xf32>
    %38 = tpu.matmul %35, %37, %cst_23 {dimension_numbers = #tpu.dot_dimension_numbers<[1], [0], [0], [1], [0, 0, 1, 1], [], []>} : vector<1x256xbf16>, vector<256x32xbf16>, vector<1x32xf32> -> vector<1x32xf32>
    %39 = arith.addf %33, %38 : vector<1x32xf32>
    %40 = vector.extract_strided_slice %8 {offsets = [5, 0], sizes = [1, 256], strides = [1, 1]} : vector<8x256xf32> to vector<1x256xf32>
    %41 = arith.truncf %40 : vector<1x256xf32> to vector<1x256xbf16>
    %c5 = arith.constant 5 : index
    %c0_24 = arith.constant 0 : index
    %c0_25 = arith.constant 0 : index
    %42 = vector.load %arg4[%c5, %c0_24, %c0_25] : memref<8x256x32xbf16, #tpu.memory_space<vmem>>, vector<1x256x32xbf16>
    %43 = vector.shape_cast %42 : vector<1x256x32xbf16> to vector<256x32xbf16>
    %cst_26 = arith.constant dense<0.000000e+00> : vector<1x32xf32>
    %44 = tpu.matmul %41, %43, %cst_26 {dimension_numbers = #tpu.dot_dimension_numbers<[1], [0], [0], [1], [0, 0, 1, 1], [], []>} : vector<1x256xbf16>, vector<256x32xbf16>, vector<1x32xf32> -> vector<1x32xf32>
    %45 = arith.addf %39, %44 : vector<1x32xf32>
    %46 = vector.extract_strided_slice %8 {offsets = [6, 0], sizes = [1, 256], strides = [1, 1]} : vector<8x256xf32> to vector<1x256xf32>
    %47 = arith.truncf %46 : vector<1x256xf32> to vector<1x256xbf16>
    %c6 = arith.constant 6 : index
    %c0_27 = arith.constant 0 : index
    %c0_28 = arith.constant 0 : index
    %48 = vector.load %arg4[%c6, %c0_27, %c0_28] : memref<8x256x32xbf16, #tpu.memory_space<vmem>>, vector<1x256x32xbf16>
    %49 = vector.shape_cast %48 : vector<1x256x32xbf16> to vector<256x32xbf16>
    %cst_29 = arith.constant dense<0.000000e+00> : vector<1x32xf32>
    %50 = tpu.matmul %47, %49, %cst_29 {dimension_numbers = #tpu.dot_dimension_numbers<[1], [0], [0], [1], [0, 0, 1, 1], [], []>} : vector<1x256xbf16>, vector<256x32xbf16>, vector<1x32xf32> -> vector<1x32xf32>
    %51 = arith.addf %45, %50 : vector<1x32xf32>
    %52 = vector.extract_strided_slice %8 {offsets = [7, 0], sizes = [1, 256], strides = [1, 1]} : vector<8x256xf32> to vector<1x256xf32>
    %53 = arith.truncf %52 : vector<1x256xf32> to vector<1x256xbf16>
    %c7 = arith.constant 7 : index
    %c0_30 = arith.constant 0 : index
    %c0_31 = arith.constant 0 : index
    %54 = vector.load %arg4[%c7, %c0_30, %c0_31] : memref<8x256x32xbf16, #tpu.memory_space<vmem>>, vector<1x256x32xbf16>
    %55 = vector.shape_cast %54 : vector<1x256x32xbf16> to vector<256x32xbf16>
    %cst_32 = arith.constant dense<0.000000e+00> : vector<1x32xf32>
    %56 = tpu.matmul %53, %55, %cst_32 {dimension_numbers = #tpu.dot_dimension_numbers<[1], [0], [0], [1], [0, 0, 1, 1], [], []>} : vector<1x256xbf16>, vector<256x32xbf16>, vector<1x32xf32> -> vector<1x32xf32>
    %57 = arith.addf %51, %56 : vector<1x32xf32>
    %c0_33 = arith.constant 0 : index
    %c0_34 = arith.constant 0 : index
    %58 = vector.load %arg5[%c0_33, %c0_34] : memref<1x32xf32, #tpu.memory_space<vmem>>, vector<1x32xf32>
    %59 = arith.addf %57, %58 : vector<1x32xf32>
    %cst_35 = arith.constant 0.000000e+00 : f32
    %60 = vector.broadcast %cst_35 : f32 to vector<1x32xf32>
    %61 = arith.maximumf %59, %60 : vector<1x32xf32>
    %c0_36 = arith.constant 0 : index
    %c0_37 = arith.constant 0 : index
    %62 = vector.load %arg6[%c0_36, %c0_37] : memref<32x128xf32, #tpu.memory_space<vmem>>, vector<32x128xf32>
    %cst_38 = arith.constant dense<0.000000e+00> : vector<1x128xf32>
    %63 = tpu.matmul %61, %62, %cst_38 {dimension_numbers = #tpu.dot_dimension_numbers<[1], [0], [0], [1], [0, 0, 1, 1], [], []>} : vector<1x32xf32>, vector<32x128xf32>, vector<1x128xf32> -> vector<1x128xf32>
    %c0_39 = arith.constant 0 : index
    %c0_40 = arith.constant 0 : index
    %64 = vector.load %arg7[%c0_39, %c0_40] : memref<1x128xf32, #tpu.memory_space<vmem>>, vector<1x128xf32>
    %65 = arith.addf %63, %64 : vector<1x128xf32>
    %66 = vector.shape_cast %65 : vector<1x128xf32> to vector<1x1x128xf32>
    %c0_41 = arith.constant 0 : index
    %c0_42 = arith.constant 0 : index
    %c0_43 = arith.constant 0 : index
    %67 = vector.load %arg8[%c0_41, %c0_42, %c0_43] : memref<1x1x128xf32, #tpu.memory_space<vmem>>, vector<1x1x128xf32>
    tpu.vector_store %arg8[%c0_41, %c0_42, %c0_43], %66 {strides = array<i32>} : memref<1x1x128xf32, #tpu.memory_space<vmem>>, vector<1x1x128xf32>,
    return
  }
  func.func @transform_0(%arg0: i32) -> (i32, i32, i32) {
    %c0_i32 = arith.constant 0 : i32
    %c0_i32_0 = arith.constant 0 : i32
    %c0_i32_1 = arith.constant 0 : i32
    return %arg0, %c0_i32, %c0_i32_0 : i32, i32, i32
  }
  func.func @transform_1(%arg0: i32) -> (i32, i32) {
    %c0_i32 = arith.constant 0 : i32
    %c0_i32_0 = arith.constant 0 : i32
    %c0_i32_1 = arith.constant 0 : i32
    return %c0_i32, %c0_i32_0 : i32, i32
  }
  func.func @transform_2(%arg0: i32) -> (i32, i32) {
    %c0_i32 = arith.constant 0 : i32
    %c0_i32_0 = arith.constant 0 : i32
    %c0_i32_1 = arith.constant 0 : i32
    return %c0_i32, %c0_i32_0 : i32, i32
  }
  func.func @transform_3(%arg0: i32) -> (i32, i32, i32) {
    %c0_i32 = arith.constant 0 : i32
    %c0_i32_0 = arith.constant 0 : i32
    %c0_i32_1 = arith.constant 0 : i32
    %c0_i32_2 = arith.constant 0 : i32
    return %c0_i32, %c0_i32_0, %c0_i32_1 : i32, i32, i32
  }
  func.func @transform_4(%arg0: i32) -> (i32, i32) {
    %c0_i32 = arith.constant 0 : i32
    %c0_i32_0 = arith.constant 0 : i32
    %c0_i32_1 = arith.constant 0 : i32
    return %c0_i32, %c0_i32_0 : i32, i32
  }
  func.func @transform_5(%arg0: i32) -> (i32, i32) {
    %c0_i32 = arith.constant 0 : i32
    %c0_i32_0 = arith.constant 0 : i32
    %c0_i32_1 = arith.constant 0 : i32
    return %c0_i32, %c0_i32_0 : i32, i32
  }
  func.func @transform_6(%arg0: i32) -> (i32, i32) {
    %c0_i32 = arith.constant 0 : i32
    %c0_i32_0 = arith.constant 0 : i32
    %c0_i32_1 = arith.constant 0 : i32
    return %c0_i32, %c0_i32_0 : i32, i32
  }
  func.func @transform_7(%arg0: i32) -> (i32, i32, i32) {
    %c0_i32 = arith.constant 0 : i32
    %c0_i32_0 = arith.constant 0 : i32
    %c0_i32_1 = arith.constant 0 : i32
    return %arg0, %c0_i32, %c0_i32_0 : i32, i32, i32
  }
}

</mosaic_0001>

<llo_original>
// kernel: _policy_forward.1
$region0: #{_policy_forward.1}
  #allocation0 [shape = 'u32[]', space=smem, size = 0x4, offset = 0x4, fixed_abs, tag = 'smem constant byte address 0x4 - core index']
  #allocation1 [shape = 'u32[144,128]{1,0:T(1,128)}', space=vmem, size = 0x12000, scoped, tag = 'internal scratch']
  %s0 = inlined_call_operand.vmem [shape: f32[2,36,256], index: 0, kind: input, shape index: {}]
  %s1 = inlined_call_operand.vmem [shape: f32[8,36], index: 1, kind: input, shape index: {}]
  %s2 = inlined_call_operand.vmem [shape: f32[8,1], index: 2, kind: input, shape index: {}]
  %s3 = inlined_call_operand.vmem [shape: bf16[8,256,32], index: 3, kind: input, shape index: {}]
  %s4 = inlined_call_operand.vmem [shape: f32[1,32], index: 4, kind: input, shape index: {}]
  %s5 = inlined_call_operand.vmem [shape: f32[32,128], index: 5, kind: input, shape index: {}]
  %s6 = inlined_call_operand.vmem [shape: f32[1,128], index: 6, kind: input, shape index: {}]
  %s7 = inlined_call_operand.vmem [shape: f32[2,1,128], index: 7, kind: output, shape index: {}]
  %s8 = sld [smem:[#allocation0]]
  $region61: #{_policy_forward.1} parent=0
    _
  %s10 = ssub.s32 1, %s8
  %s11 = scalar_select 0, %s10, %s8
  loop: start=0, step=1, limit=4
  $region2: #{_policy_forward.1} parent=0 // loop_pre_header
    _
  $region3: #{_policy_forward.1} parent=0 // loop_header
    %s13 = sphi 0, %s17
    %p14 = scmp.ge.s32.totalorder %s13, 4
    %s23 = sphi 0, %s25
    %s26 = sphi 0, %s23
    %s27 = sphi 0, %s26
    %s43 = sphi 0, %s27
    %s47 = sphi 0, %s47
    %s49 = sphi 0, %s47
    %s50 = sphi 0, %s49
    %s64 = sphi 0, %s50
    %s68 = sphi 0, %s68
    %s70 = sphi 0, %s68
    %s71 = sphi 0, %s70
    %s85 = sphi 0, %s71
    %s89 = sphi 0, %s89
    %s91 = sphi 0, %s89
    %s92 = sphi 0, %s91
    %s106 = sphi 0, %s92
    %s110 = sphi 0, %s110
    %s112 = sphi 0, %s110
    %s113 = sphi 0, %s112
    %s127 = sphi 0, %s113
    %s131 = sphi 0, %s131
    %s133 = sphi 0, %s131
    %s134 = sphi 0, %s133
    %s148 = sphi 0, %s134
    %s152 = sphi 0, %s152
    %s154 = sphi 0, %s152
    %s155 = sphi 0, %s154
    %s169 = sphi 0, %s155
    %s175 = sphi 0, %s177
    %s178 = sphi 0, %s175
    %s179 = sphi 0, %s178
    %s195 = sphi 0, %s179
  $region4: #{_policy_forward.1} parent=0 // loop_header_branch
    %16 = sbr.rel (%p14) target = $region8
  $region5: #{_policy_forward.1} parent=0 // loop_body
    %s18 = ssub.s32 %s13, 1
    %s19 = ssub.s32 %s13, 2
    %s20 = sadd.s32 %s13, 1
    %s21 = ssub.s32 %s13, %s20
    %p22 = scmp.eq.s32.totalorder %s21, 0
    %s24 = sadd.s32 %s23, 1
    %s25 = scalar_select %p22, %s23, %s24
    %p28 = pneg %p22
    %p29 = scmp.eq.s32.totalorder %s13, 1
    %p30 = por %p28, %p29
    %p31 = scmp.ne.s32.totalorder %s23, %s26
    %p32 = scmp.eq.s32.totalorder %s13, 0
    %p33 = por %p31, %p32
    %p34 = scmp.ne.s32.totalorder %s23, %s26
    %p35 = scmp.eq.s32.totalorder %s18, 1
    %p36 = por %p34, %p35
    %p37 = scmp.ne.s32.totalorder %s26, %s27
    %p38 = scmp.eq.s32.totalorder %s18, 0
    %p39 = por %p37, %p38
    %p40 = scmp.ne.s32.totalorder %s26, %s27
    %p41 = scmp.eq.s32.totalorder %s19, 1
    %p42 = por %p40, %p41
    %p44 = scmp.ne.s32.totalorder %s27, %s43
    %p45 = scmp.eq.s32.totalorder %s19, 0
    %p46 = por %p44, %p45
    %s48 = sadd.s32 %s47, 1
    %p51 = scmp.eq.s32.totalorder %s13, 1
    %p52 = scmp.ne.s32.totalorder %s47, %s49
    %p53 = scmp.eq.s32.totalorder %s13, 0
    %p54 = por %p52, %p53
    %p55 = scmp.ne.s32.totalorder %s47, %s49
    %p56 = scmp.eq.s32.totalorder %s18, 1
    %p57 = por %p55, %p56
    %p58 = scmp.ne.s32.totalorder %s49, %s50
    %p59 = scmp.eq.s32.totalorder %s18, 0
    %p60 = por %p58, %p59
    %p61 = scmp.ne.s32.totalorder %s49, %s50
    %p62 = scmp.eq.s32.totalorder %s19, 1
    %p63 = por %p61, %p62
    %p65 = scmp.ne.s32.totalorder %s50, %s64
    %p66 = scmp.eq.s32.totalorder %s19, 0
    %p67 = por %p65, %p66
    %s69 = sadd.s32 %s68, 1
    %p72 = scmp.eq.s32.totalorder %s13, 1
    %p73 = scmp.ne.s32.totalorder %s68, %s70
    %p74 = scmp.eq.s32.totalorder %s13, 0
    %p75 = por %p73, %p74
    %p76 = scmp.ne.s32.totalorder %s68, %s70
    %p77 = scmp.eq.s32.totalorder %s18, 1
    %p78 = por %p76, %p77
    %p79 = scmp.ne.s32.totalorder %s70, %s71
    %p80 = scmp.eq.s32.totalorder %s18, 0
    %p81 = por %p79, %p80
    %p82 = scmp.ne.s32.totalorder %s70, %s71
    %p83 = scmp.eq.s32.totalorder %s19, 1
    %p84 = por %p82, %p83
    %p86 = scmp.ne.s32.totalorder %s71, %s85
    %p87 = scmp.eq.s32.totalorder %s19, 0
    %p88 = por %p86, %p87
    %s90 = sadd.s32 %s89, 1
    %p93 = scmp.eq.s32.totalorder %s13, 1
    %p94 = scmp.ne.s32.totalorder %s89, %s91
    %p95 = scmp.eq.s32.totalorder %s13, 0
    %p96 = por %p94, %p95
    %p97 = scmp.ne.s32.totalorder %s89, %s91
    %p98 = scmp.eq.s32.totalorder %s18, 1
    %p99 = por %p97, %p98
    %p100 = scmp.ne.s32.totalorder %s91, %s92
    %p101 = scmp.eq.s32.totalorder %s18, 0
    %p102 = por %p100, %p101
    %p103 = scmp.ne.s32.totalorder %s91, %s92
    %p104 = scmp.eq.s32.totalorder %s19, 1
    %p105 = por %p103, %p104
    %p107 = scmp.ne.s32.totalorder %s92, %s106
    %p108 = scmp.eq.s32.totalorder %s19, 0
    %p109 = por %p107, %p108
    %s111 = sadd.s32 %s110, 1
    %p114 = scmp.eq.s32.totalorder %s13, 1
    %p115 = scmp.ne.s32.totalorder %s110, %s112
    %p116 = scmp.eq.s32.totalorder %s13, 0
    %p117 = por %p115, %p116
    %p118 = scmp.ne.s32.totalorder %s110, %s112
    %p119 = scmp.eq.s32.totalorder %s18, 1
    %p120 = por %p118, %p119
    %p121 = scmp.ne.s32.totalorder %s112, %s113
    %p122 = scmp.eq.s32.totalorder %s18, 0
    %p123 = por %p121, %p122
    %p124 = scmp.ne.s32.totalorder %s112, %s113
    %p125 = scmp.eq.s32.totalorder %s19, 1
    %p126 = por %p124, %p125
    %p128 = scmp.ne.s32.totalorder %s113, %s127
    %p129 = scmp.eq.s32.totalorder %s19, 0
    %p130 = por %p128, %p129
    %s132 = sadd.s32 %s131, 1
    %p135 = scmp.eq.s32.totalorder %s13, 1
    %p136 = scmp.ne.s32.totalorder %s131, %s133
    %p137 = scmp.eq.s32.totalorder %s13, 0
    %p138 = por %p136, %p137
    %p139 = scmp.ne.s32.totalorder %s131, %s133
    %p140 = scmp.eq.s32.totalorder %s18, 1
    %p141 = por %p139, %p140
    %p142 = scmp.ne.s32.totalorder %s133, %s134
    %p143 = scmp.eq.s32.totalorder %s18, 0
    %p144 = por %p142, %p143
    %p145 = scmp.ne.s32.totalorder %s133, %s134
    %p146 = scmp.eq.s32.totalorder %s19, 1
    %p147 = por %p145, %p146
    %p149 = scmp.ne.s32.totalorder %s134, %s148
    %p150 = scmp.eq.s32.totalorder %s19, 0
    %p151 = por %p149, %p150
    %s153 = sadd.s32 %s152, 1
    %p156 = scmp.eq.s32.totalorder %s13, 1
    %p157 = scmp.ne.s32.totalorder %s152, %s154
    %p158 = scmp.eq.s32.totalorder %s13, 0
    %p159 = por %p157, %p158
    %p160 = scmp.ne.s32.totalorder %s152, %s154
    %p161 = scmp.eq.s32.totalorder %s18, 1
    %p162 = por %p160, %p161
    %p163 = scmp.ne.s32.totalorder %s154, %s155
    %p164 = scmp.eq.s32.totalorder %s18, 0
    %p165 = por %p163, %p164
    %p166 = scmp.ne.s32.totalorder %s154, %s155
    %p167 = scmp.eq.s32.totalorder %s19, 1
    %p168 = por %p166, %p167
    %p170 = scmp.ne.s32.totalorder %s155, %s169
    %p171 = scmp.eq.s32.totalorder %s19, 0
    %p172 = por %p170, %p171
    %s173 = ssub.s32 %s13, %s20
    %p174 = scmp.eq.s32.totalorder %s173, 0
    %s176 = sadd.s32 %s175, 1
    %s177 = scalar_select %p174, %s175, %s176
    %p180 = pneg %p174
    %p181 = scmp.eq.s32.totalorder %s13, 1
    %p182 = por %p180, %p181
    %p183 = scmp.ne.s32.totalorder %s175, %s178
    %p184 = scmp.eq.s32.totalorder %s13, 0
    %p185 = por %p183, %p184
    %p186 = scmp.ne.s32.totalorder %s175, %s178
    %p187 = scmp.eq.s32.totalorder %s18, 1
    %p188 = por %p186, %p187
    %p189 = scmp.ne.s32.totalorder %s178, %s179
    %p190 = scmp.eq.s32.totalorder %s18, 0
    %p191 = por %p189, %p190
    %p192 = scmp.ne.s32.totalorder %s178, %s179
    %p193 = scmp.eq.s32.totalorder %s19, 1
    %p194 = por %p192, %p193
    %p196 = scmp.ne.s32.totalorder %s179, %s195
    %p197 = scmp.eq.s32.totalorder %s19, 0
    %p198 = por %p196, %p197
    %p199 = scmp.le.s32.totalorder 1, %s13
    %p200 = scmp.lt.s32.totalorder %s13, 3
    %p201 = pnand %p199, %p200
    %p202 = pneg %p201
    // Predicated region
    $region9: #{_policy_forward.1} parent=5 // pred_check
      _
    $region10: #{_policy_forward.1} parent=5 // pred_check_branch
      %204 = sbr.rel (%p201) target = $region12
    $region11: #{_policy_forward.1} parent=5 // pred_region
      %s205 = ssub.s32 %s13, 1
      // Predicated region
      $region13: #{_policy_forward.1} parent=11 // pred_check
        %p206 = pneg %p60
      $region14: #{_policy_forward.1} parent=11 // pred_check_branch
        %208 = sbr.rel (%p206) target = $region16
      $region15: #{_policy_forward.1} parent=11 // pred_region
        _
      $region16: #{_policy_forward.1} parent=11 // pred_fallthru
        _
      // Predicated region
      $region17: #{_policy_forward.1} parent=11 // pred_check
        %p209 = pneg %p81
      $region18: #{_policy_forward.1} parent=11 // pred_check_branch
        %211 = sbr.rel (%p209) target = $region20
      $region19: #{_policy_forward.1} parent=11 // pred_region
        _
      $region20: #{_policy_forward.1} parent=11 // pred_fallthru
        _
      // Predicated region
      $region21: #{_policy_forward.1} parent=11 // pred_check
        %p212 = pneg %p102
      $region22: #{_policy_forward.1} parent=11 // pred_check_branch
        %214 = sbr.rel (%p212) target = $region24
      $region23: #{_policy_forward.1} parent=11 // pred_region
        _
      $region24: #{_policy_forward.1} parent=11 // pred_fallthru
        _
      // Predicated region
      $region25: #{_policy_forward.1} parent=11 // pred_check
        %p215 = pneg %p123
      $region26: #{_policy_forward.1} parent=11 // pred_check_branch
        %217 = sbr.rel (%p215) target = $region28
      $region27: #{_policy_forward.1} parent=11 // pred_region
        _
      $region28: #{_policy_forward.1} parent=11 // pred_fallthru
        _
      // Predicated region
      $region29: #{_policy_forward.1} parent=11 // pred_check
        %p218 = pneg %p144
      $region30: #{_policy_forward.1} parent=11 // pred_check_branch
        %220 = sbr.rel (%p218) target = $region32
      $region31: #{_policy_forward.1} parent=11 // pred_region
        _
      $region32: #{_policy_forward.1} parent=11 // pred_fallthru
        _
      // Predicated region
      $region33: #{_policy_forward.1} parent=11 // pred_check
        %p221 = pneg %p165
      $region34: #{_policy_forward.1} parent=11 // pred_check_branch
        %223 = sbr.rel (%p221) target = $region36
      $region35: #{_policy_forward.1} parent=11 // pred_region
        _
      $region36: #{_policy_forward.1} parent=11 // pred_fallthru
        _
    $region12: #{_policy_forward.1} parent=5 // pred_fallthru
      _
    %p224 = scmp.lt.s32.totalorder %s13, 2
    // Predicated region
    $region37: #{_policy_forward.1} parent=5 // pred_check
      %p225 = pneg %p224
    $region38: #{_policy_forward.1} parent=5 // pred_check_branch
      %227 = sbr.rel (%p225) target = $region40
    $region39: #{_policy_forward.1} parent=5 // pred_region
      // Predicated region
      $region41: #{_policy_forward.1} parent=39 // pred_check
        %p228 = pneg %p33
      $region42: #{_policy_forward.1} parent=39 // pred_check_branch
        %230 = sbr.rel (%p228) target = $region44
      $region43: #{_policy_forward.1} parent=39 // pred_region
        %p231 = scmp.lt.s32.totalorder %s13, 1
        %s232 = scalar_select %p231, %s13, 1
        %s233 = smul.addr %s232, 10
        %s234 = smul.addr %s233, 8
        %s235 = scalar_lea.vmem %s0, %s234
      $region44: #{_policy_forward.1} parent=39 // pred_fallthru
        _
    $region40: #{_policy_forward.1} parent=5 // pred_fallthru
      _
    %p236 = scmp.le.s32.totalorder 1, %s13
    %p237 = scmp.lt.s32.totalorder %s13, 3
    %p238 = pnand %p236, %p237
    %p239 = pneg %p238
    // Predicated region
    $region45: #{_policy_forward.1} parent=5 // pred_check
      _
    $region46: #{_policy_forward.1} parent=5 // pred_check_branch
      %241 = sbr.rel (%p238) target = $region48
    $region47: #{_policy_forward.1} parent=5 // pred_region
      %s242 = ssub.s32 %s13, 1
      %p243 = scmp.lt.s32.totalorder %s18, 1
      %s244 = scalar_select %p243, %s18, 1
      %s245 = smul.addr %s244, 10
      %s246 = smul.addr %s245, 8
      %s247 = scalar_lea.vmem %s0, %s246
      %p248 = pneg %p39
      %p249 = pneg %p36
      %p250 = pneg %p60
      %p251 = pneg %p57
      %p252 = pneg %p81
      %p253 = pneg %p78
      %p254 = pneg %p102
      %p255 = pneg %p99
      %p256 = pneg %p123
      %p257 = pneg %p120
      %p258 = pneg %p144
      %p259 = pneg %p141
      %p260 = pneg %p165
      %p261 = pneg %p162
      %p262 = pneg %p191
      %p263 = pneg %p188
      %p264 = scmp.lt.s32.totalorder %s18, 1
      %s265 = scalar_select %p264, %s18, 1
      %s266 = scalar_lea.vmem %s7, %s265
      %p267 = scmp.lt.s32.totalorder %s18, 1
      %s268 = scalar_select %p267, %s18, 1
      %s269 = smul.addr %s268, 10
      %s270 = smul.addr %s269, 8
      %s271 = scalar_lea.vmem %s0, %s270
      %p272 = scmp.lt.s32.totalorder %s18, 1
      %s273 = scalar_select %p272, %s18, 1
      %s274 = scalar_lea.vmem %s7, %s273
      %v276 = vld [vmem:[%s1] sm:$0xff]
      %v277 = vld [vmem:[%s271] sm:$0xff]
      %v278 = vld [vmem:[%s271 + $0x8] sm:$0xff]
      %v279 = vld [vmem:[%s271 + $0x10] sm:$0xff]
      %v280 = vld [vmem:[%s271 + $0x18] sm:$0xff]
      %v281 = vld [vmem:[%s271 + $0x20] sm:$0xff]
      %v282 = vld [vmem:[%s271 + $0x28] sm:$0xff]
      %v283 = vld [vmem:[%s271 + $0x30] sm:$0xff]
      %v284 = vld [vmem:[%s271 + $0x38] sm:$0xff]
      %v285 = vld [vmem:[%s271 + $0x40] sm:$0xf]
      %v286 = vld [vmem:[%s271 + $0x48] sm:$0xf]
      %v287 = vld [vmem:[%s2] sm:$0xff]
      %289 = vset.pattern.permute.xlu0 0
      %290 = vperm.xlu0 %289, %v287
      %v291 = vpop.permute.xlu0 %290
      %vm293 = vcmask 293888
      %v295 = vsel %vm293, %v276, 0
      %vm297 = vcmask 1043456
      %v299 = vsel %vm297, %v285, 0
      %v302 = vsel %vm297, %v286, 0
      %304 = vmatprep.subr.mxu0 %v278
      %305 = vmatpush1.msra.mxu0 %v277
      %306 = vmatprep.subr.mxu0 %v280
      %307 = vmatpush1.msra.mxu0 %v279
      %308 = vmatprep.subr.mxu0 %v282
      %309 = vmatpush1.msra.mxu0 %v281
      %310 = vmatprep.subr.mxu0 %v284
      %311 = vmatpush1.msra.mxu0 %v283
      %312 = vmatprep.subr.mxu0 %v302
      %313 = vmatpush1.msra.mxu0 %v299
      %314 = vmatprep.subr.mxu0 0.0
      %315 = vmatpush1.msra.mxu0 0.0
      %316 = vmatprep.subr.mxu0 0.0
      %317 = vmatpush1.msra.mxu0 0.0
      %318 = vmatprep.subr.mxu0 0.0
      %319 = vmatpush1.msra.mxu0 0.0
      %320 = vmatprep.subr.mxu0 0.0
      %321 = vmatpush1.msra.mxu0 0.0
      %322 = vmatprep.subr.mxu0 0.0
      %323 = vmatpush1.msra.mxu0 0.0
      %324 = vmatprep.subr.mxu0 0.0
      %325 = vmatpush1.msra.mxu0 0.0
      %326 = vmatprep.subr.mxu0 0.0
      %327 = vmatpush1.msra.mxu0 0.0
      %328 = vmatprep.subr.mxu0 0.0
      %329 = vmatpush1.msra.mxu0 0.0
      %330 = vmatprep.subr.mxu0 0.0
      %331 = vmatpush1.msra.mxu0 0.0
      %332 = vmatprep.subr.mxu0 0.0
      %333 = vmatpush1.msra.mxu0 0.0
      %334 = vmatprep.subr.mxu0 0.0
      %335 = vmatpush1.msra.mxu0 0.0
      %336 = vmatprep.subr.mxu0 0.0
      %337 = vmatpush1.msra.mxu0 0.0
      %338 = vmatprep.subr.mxu0 0.0
      %339 = vmatpush1.msra.mxu0 0.0
      %340 = vmatprep.subr.mxu0 0.0
      %341 = vmatpush1.msra.mxu0 0.0
      %342 = vmatprep.subr.mxu0 0.0
      %343 = vmatpush1.msra.mxu0 0.0
      %344 = vmatprep.subr.mxu0 0.0
      %345 = vmatpush1.msra.mxu0 0.0
      %346 = vmatprep.subr.mxu0 0.0
      %347 = vmatpush1.msra.mxu0 0.0
      %348 = vmatprep.subr.mxu0 0.0
      %349 = vmatpush1.msra.mxu0 0.0
      %350 = vmatprep.subr.mxu0 0.0
      %351 = vmatpush1.msra.mxu0 0.0
      %352 = vmatprep.subr.mxu0 0.0
      %353 = vmatpush1.msra.mxu0 0.0
      %354 = vmatprep.subr.mxu0 0.0
      %355 = vmatpush1.msra.mxu0 0.0
      %356 = vmatprep.subr.mxu0 0.0
      %357 = vmatpush1.msra.mxu0 0.0
      %358 = vmatprep.subr.mxu0 0.0
      %359 = vmatpush1.msra.mxu0 0.0
      %360 = vmatprep.subr.mxu0 0.0
      %361 = vmatpush1.msra.mxu0 0.0
      %362 = vmatprep.subr.mxu0 0.0
      %363 = vmatpush1.msra.mxu0 0.0
      %364 = vmatprep.subr.mxu0 0.0
      %365 = vmatpush1.msra.mxu0 0.0
      %366 = vmatprep.subr.mxu0 0.0
      %367 = vmatpush1.msra.mxu0 0.0
      %368 = vmatprep.mubr.f32.mxu0 0.0
      %369 = vmatmul.mubr.f32.gmra.mrb[0].mxu0 %v295
      %v370 = vpop.f32.mrb[0].mxu0
      %v371 = vadd.f32 %v291, %v370
      %v372 = vpop.f32.mrb[0].mxu0
      %v373 = vadd.f32 %v291, %v372
      %374 = vdwg.mxu0
      %v375 = vmax.f32 %v371, 0.0
      %v376 = vmax.f32 %v373, 0.0
      %v377 = vpack.c.bf16 %v375, %v375
      %v378 = vpack.c.bf16 %v376, %v376
      %v379 = vld [vmem:[%s3] sm:$0xf]
      %v380 = vld [vmem:[%s3 + $0x4] sm:$0xf]
      %v381 = vld [vmem:[%s3 + $0x8] sm:$0xf]
      %v382 = vld [vmem:[%s3 + $0xc] sm:$0xf]
      %v383 = vld [vmem:[%s3 + $0x10] sm:$0xf]
      %v384 = vld [vmem:[%s3 + $0x14] sm:$0xf]
      %v385 = vld [vmem:[%s3 + $0x18] sm:$0xf]
      %v386 = vld [vmem:[%s3 + $0x1c] sm:$0xf]
      %v387 = vld [vmem:[%s3 + $0x20] sm:$0xf]
      %v388 = vld [vmem:[%s3 + $0x24] sm:$0xf]
      %v389 = vld [vmem:[%s3 + $0x28] sm:$0xf]
      %v390 = vld [vmem:[%s3 + $0x2c] sm:$0xf]
      %v391 = vld [vmem:[%s3 + $0x30] sm:$0xf]
      %v392 = vld [vmem:[%s3 + $0x34] sm:$0xf]
      %v393 = vld [vmem:[%s3 + $0x38] sm:$0xf]
      %v394 = vld [vmem:[%s3 + $0x3c] sm:$0xf]
      %v395 = vld [vmem:[%s3 + $0x40] sm:$0xf]
      %v396 = vld [vmem:[%s3 + $0x44] sm:$0xf]
      %v397 = vld [vmem:[%s3 + $0x48] sm:$0xf]
      %v398 = vld [vmem:[%s3 + $0x4c] sm:$0xf]
      %v399 = vld [vmem:[%s3 + $0x50] sm:$0xf]
      %v400 = vld [vmem:[%s3 + $0x54] sm:$0xf]
      %v401 = vld [vmem:[%s3 + $0x58] sm:$0xf]
      %v402 = vld [vmem:[%s3 + $0x5c] sm:$0xf]
      %v403 = vld [vmem:[%s3 + $0x60] sm:$0xf]
      %v404 = vld [vmem:[%s3 + $0x64] sm:$0xf]
      %v405 = vld [vmem:[%s3 + $0x68] sm:$0xf]
      %v406 = vld [vmem:[%s3 + $0x6c] sm:$0xf]
      %v407 = vld [vmem:[%s3 + $0x70] sm:$0xf]
      %v408 = vld [vmem:[%s3 + $0x74] sm:$0xf]
      %v409 = vld [vmem:[%s3 + $0x78] sm:$0xf]
      %v410 = vld [vmem:[%s3 + $0x7c] sm:$0xf]
      %s411 = scalar_lea.vmem %s3, 128
      %v412 = vld [vmem:[%s411] sm:$0xf]
      %v413 = vld [vmem:[%s411 + $0x4] sm:$0xf]
      %v414 = vld [vmem:[%s411 + $0x8] sm:$0xf]
      %v415 = vld [vmem:[%s411 + $0xc] sm:$0xf]
      %v416 = vld [vmem:[%s411 + $0x10] sm:$0xf]
      %v417 = vld [vmem:[%s411 + $0x14] sm:$0xf]
      %v418 = vld [vmem:[%s411 + $0x18] sm:$0xf]
      %v419 = vld [vmem:[%s411 + $0x1c] sm:$0xf]
      %v420 = vld [vmem:[%s411 + $0x20] sm:$0xf]
      %v421 = vld [vmem:[%s411 + $0x24] sm:$0xf]
      %v422 = vld [vmem:[%s411 + $0x28] sm:$0xf]
      %v423 = vld [vmem:[%s411 + $0x2c] sm:$0xf]
      %v424 = vld [vmem:[%s411 + $0x30] sm:$0xf]
      %v425 = vld [vmem:[%s411 + $0x34] sm:$0xf]
      %v426 = vld [vmem:[%s411 + $0x38] sm:$0xf]
      %v427 = vld [vmem:[%s411 + $0x3c] sm:$0xf]
      %v428 = vld [vmem:[%s411 + $0x40] sm:$0xf]
      %v429 = vld [vmem:[%s411 + $0x44] sm:$0xf]
      %v430 = vld [vmem:[%s411 + $0x48] sm:$0xf]
      %v431 = vld [vmem:[%s411 + $0x4c] sm:$0xf]
      %v432 = vld [vmem:[%s411 + $0x50] sm:$0xf]
      %v433 = vld [vmem:[%s411 + $0x54] sm:$0xf]
      %v434 = vld [vmem:[%s411 + $0x58] sm:$0xf]
      %v435 = vld [vmem:[%s411 + $0x5c] sm:$0xf]
      %v436 = vld [vmem:[%s411 + $0x60] sm:$0xf]
      %v437 = vld [vmem:[%s411 + $0x64] sm:$0xf]
      %v438 = vld [vmem:[%s411 + $0x68] sm:$0xf]
      %v439 = vld [vmem:[%s411 + $0x6c] sm:$0xf]
      %v440 = vld [vmem:[%s411 + $0x70] sm:$0xf]
      %v441 = vld [vmem:[%s411 + $0x74] sm:$0xf]
      %v442 = vld [vmem:[%s411 + $0x78] sm:$0xf]
      %v443 = vld [vmem:[%s411 + $0x7c] sm:$0xf]
      %v445 = vshrl.u32 %v377, 16
      %v448 = vshrl.u32 %v378, 16
      %v484 = vunpack.c.l.b16 %v412
      %v485 = vunpack.c.l.b16 %v413
      %v486 = vunpack.c.l.b16 %v414
      %v487 = vunpack.c.l.b16 %v415
      %v488 = vunpack.c.l.b16 %v416
      %v489 = vunpack.c.l.b16 %v417
      %v490 = vunpack.c.l.b16 %v418
      %v491 = vunpack.c.l.b16 %v419
      %v492 = vunpack.c.l.b16 %v420
      %v493 = vunpack.c.l.b16 %v421
      %v494 = vunpack.c.l.b16 %v422
      %v495 = vunpack.c.l.b16 %v423
      %v496 = vunpack.c.l.b16 %v424
      %v497 = vunpack.c.l.b16 %v425
      %v498 = vunpack.c.l.b16 %v426
      %v499 = vunpack.c.l.b16 %v427
      %v500 = vunpack.c.l.b16 %v428
      %v501 = vunpack.c.l.b16 %v429
      %v502 = vunpack.c.l.b16 %v430
      %v503 = vunpack.c.l.b16 %v431
      %v504 = vunpack.c.l.b16 %v432
      %v505 = vunpack.c.l.b16 %v433
      %v506 = vunpack.c.l.b16 %v434
      %v507 = vunpack.c.l.b16 %v435
      %v508 = vunpack.c.l.b16 %v436
      %v509 = vunpack.c.l.b16 %v437
      %v510 = vunpack.c.l.b16 %v438
      %v511 = vunpack.c.l.b16 %v439
      %v512 = vunpack.c.l.b16 %v440
      %v513 = vunpack.c.l.b16 %v441
      %v514 = vunpack.c.l.b16 %v442
      %v515 = vunpack.c.l.b16 %v443
      %v516 = vpack.c.b16 %v485, %v484
      %v517 = vpack.c.b16 %v487, %v486
      %v518 = vpack.c.b16 %v489, %v488
      %v519 = vpack.c.b16 %v491, %v490
      %v520 = vpack.c.b16 %v493, %v492
      %v521 = vpack.c.b16 %v495, %v494
      %v522 = vpack.c.b16 %v497, %v496
      %v523 = vpack.c.b16 %v499, %v498
      %v524 = vpack.c.b16 %v501, %v500
      %v525 = vpack.c.b16 %v503, %v502
      %v526 = vpack.c.b16 %v505, %v504
      %v527 = vpack.c.b16 %v507, %v506
      %v528 = vpack.c.b16 %v509, %v508
      %v529 = vpack.c.b16 %v511, %v510
      %v530 = vpack.c.b16 %v513, %v512
      %v531 = vpack.c.b16 %v515, %v514
      %548 = vmatprep.subr.bf16.mxu0 0
      %549 = vmatpush1.bf16.msra.mxu0 %v516
      %550 = vmatprep.subr.bf16.mxu0 0
      %551 = vmatpush1.bf16.msra.mxu0 %v517
      %552 = vmatprep.subr.bf16.mxu0 0
      %553 = vmatpush1.bf16.msra.mxu0 %v518
      %554 = vmatprep.subr.bf16.mxu0 0
      %555 = vmatpush1.bf16.msra.mxu0 %v519
      %556 = vmatprep.subr.bf16.mxu0 0
      %557 = vmatpush1.bf16.msra.mxu0 %v520
      %558 = vmatprep.subr.bf16.mxu0 0
      %559 = vmatpush1.bf16.msra.mxu0 %v521
      %560 = vmatprep.subr.bf16.mxu0 0
      %561 = vmatpush1.bf16.msra.mxu0 %v522
      %562 = vmatprep.subr.bf16.mxu0 0
      %563 = vmatpush1.bf16.msra.mxu0 %v523
      %564 = vmatprep.subr.bf16.mxu0 0
      %565 = vmatpush1.bf16.msra.mxu0 %v524
      %566 = vmatprep.subr.bf16.mxu0 0
      %567 = vmatpush1.bf16.msra.mxu0 %v525
      %568 = vmatprep.subr.bf16.mxu0 0
      %569 = vmatpush1.bf16.msra.mxu0 %v526
      %570 = vmatprep.subr.bf16.mxu0 0
      %571 = vmatpush1.bf16.msra.mxu0 %v527
      %572 = vmatprep.subr.bf16.mxu0 0
      %573 = vmatpush1.bf16.msra.mxu0 %v528
      %574 = vmatprep.subr.bf16.mxu0 0
      %575 = vmatpush1.bf16.msra.mxu0 %v529
      %576 = vmatprep.subr.bf16.mxu0 0
      %577 = vmatpush1.bf16.msra.mxu0 %v530
      %578 = vmatprep.subr.bf16.mxu0 0
      %579 = vmatpush1.bf16.msra.mxu0 %v531
      %580 = vmatprep.mubr.bf16.mxu0 %v448
      %581 = vmatmul.mubr.bf16.gmra.mrb[0].mxu0 %v445
      %v582 = vpop.f32.mrb[0].mxu0
      %v583 = vadd.f32 0.0, %v582
      %v584 = vpop.f32.mrb[0].mxu0
      %v585 = vpop.f32.mrb[0].mxu0
      %v586 = vpop.f32.mrb[0].mxu0
      %587 = vdwg.mxu0
      %v620 = vunpack.c.l.b16 %v379
      %v621 = vunpack.c.l.b16 %v380
      %v622 = vunpack.c.l.b16 %v381
      %v623 = vunpack.c.l.b16 %v382
      %v624 = vunpack.c.l.b16 %v383
      %v625 = vunpack.c.l.b16 %v384
      %v626 = vunpack.c.l.b16 %v385
      %v627 = vunpack.c.l.b16 %v386
      %v628 = vunpack.c.l.b16 %v387
      %v629 = vunpack.c.l.b16 %v388
      %v630 = vunpack.c.l.b16 %v389
      %v631 = vunpack.c.l.b16 %v390
      %v632 = vunpack.c.l.b16 %v391
      %v633 = vunpack.c.l.b16 %v392
      %v634 = vunpack.c.l.b16 %v393
      %v635 = vunpack.c.l.b16 %v394
      %v636 = vunpack.c.l.b16 %v395
      %v637 = vunpack.c.l.b16 %v396
      %v638 = vunpack.c.l.b16 %v397
      %v639 = vunpack.c.l.b16 %v398
      %v640 = vunpack.c.l.b16 %v399
      %v641 = vunpack.c.l.b16 %v400
      %v642 = vunpack.c.l.b16 %v401
      %v643 = vunpack.c.l.b16 %v402
      %v644 = vunpack.c.l.b16 %v403
      %v645 = vunpack.c.l.b16 %v404
      %v646 = vunpack.c.l.b16 %v405
      %v647 = vunpack.c.l.b16 %v406
      %v648 = vunpack.c.l.b16 %v407
      %v649 = vunpack.c.l.b16 %v408
      %v650 = vunpack.c.l.b16 %v409
      %v651 = vunpack.c.l.b16 %v410
      %v652 = vpack.c.b16 %v621, %v620
      %v653 = vpack.c.b16 %v623, %v622
      %v654 = vpack.c.b16 %v625, %v624
      %v655 = vpack.c.b16 %v627, %v626
      %v656 = vpack.c.b16 %v629, %v628
      %v657 = vpack.c.b16 %v631, %v630
      %v658 = vpack.c.b16 %v633, %v632
      %v659 = vpack.c.b16 %v635, %v634
      %v660 = vpack.c.b16 %v637, %v636
      %v661 = vpack.c.b16 %v639, %v638
      %v662 = vpack.c.b16 %v641, %v640
      %v663 = vpack.c.b16 %v643, %v642
      %v664 = vpack.c.b16 %v645, %v644
      %v665 = vpack.c.b16 %v647, %v646
      %v666 = vpack.c.b16 %v649, %v648
      %v667 = vpack.c.b16 %v651, %v650
      %684 = vmatprep.subr.bf16.mxu0 0
      %685 = vmatpush1.bf16.msra.mxu0 %v652
      %686 = vmatprep.subr.bf16.mxu0 0
      %687 = vmatpush1.bf16.msra.mxu0 %v653
      %688 = vmatprep.subr.bf16.mxu0 0
      %689 = vmatpush1.bf16.msra.mxu0 %v654
      %690 = vmatprep.subr.bf16.mxu0 0
      %691 = vmatpush1.bf16.msra.mxu0 %v655
      %692 = vmatprep.subr.bf16.mxu0 0
      %693 = vmatpush1.bf16.msra.mxu0 %v656
      %694 = vmatprep.subr.bf16.mxu0 0
      %695 = vmatpush1.bf16.msra.mxu0 %v657
      %696 = vmatprep.subr.bf16.mxu0 0
      %697 = vmatpush1.bf16.msra.mxu0 %v658
      %698 = vmatprep.subr.bf16.mxu0 0
      %699 = vmatpush1.bf16.msra.mxu0 %v659
      %700 = vmatprep.subr.bf16.mxu0 0
      %701 = vmatpush1.bf16.msra.mxu0 %v660
      %702 = vmatprep.subr.bf16.mxu0 0
      %703 = vmatpush1.bf16.msra.mxu0 %v661
      %704 = vmatprep.subr.bf16.mxu0 0
      %705 = vmatpush1.bf16.msra.mxu0 %v662
      %706 = vmatprep.subr.bf16.mxu0 0
      %707 = vmatpush1.bf16.msra.mxu0 %v663
      %708 = vmatprep.subr.bf16.mxu0 0
      %709 = vmatpush1.bf16.msra.mxu0 %v664
      %710 = vmatprep.subr.bf16.mxu0 0
      %711 = vmatpush1.bf16.msra.mxu0 %v665
      %712 = vmatprep.subr.bf16.mxu0 0
      %713 = vmatpush1.bf16.msra.mxu0 %v666
      %714 = vmatprep.subr.bf16.mxu0 0
      %715 = vmatpush1.bf16.msra.mxu0 %v667
      %716 = vmatprep.mubr.bf16.mxu0 %v378
      %717 = vmatmul.mubr.bf16.gmra.mrb[0].mxu0 %v377
      %v718 = vpop.f32.mrb[0].mxu0
      %v719 = vadd.f32 %v583, %v718
      %v720 = vpop.f32.mrb[0].mxu0
      %v721 = vpop.f32.mrb[0].mxu0
      %v722 = vpop.f32.mrb[0].mxu0
      %723 = vdwg.mxu0
      %s724 = scalar_lea.vmem %s3, 256
      %v725 = vld [vmem:[%s724] sm:$0xf]
      %v726 = vld [vmem:[%s724 + $0x4] sm:$0xf]
      %v727 = vld [vmem:[%s724 + $0x8] sm:$0xf]
      %v728 = vld [vmem:[%s724 + $0xc] sm:$0xf]
      %v729 = vld [vmem:[%s724 + $0x10] sm:$0xf]
      %v730 = vld [vmem:[%s724 + $0x14] sm:$0xf]
      %v731 = vld [vmem:[%s724 + $0x18] sm:$0xf]
      %v732 = vld [vmem:[%s724 + $0x1c] sm:$0xf]
      %v733 = vld [vmem:[%s724 + $0x20] sm:$0xf]
      %v734 = vld [vmem:[%s724 + $0x24] sm:$0xf]
      %v735 = vld [vmem:[%s724 + $0x28] sm:$0xf]
      %v736 = vld [vmem:[%s724 + $0x2c] sm:$0xf]
      %v737 = vld [vmem:[%s724 + $0x30] sm:$0xf]
      %v738 = vld [vmem:[%s724 + $0x34] sm:$0xf]
      %v739 = vld [vmem:[%s724 + $0x38] sm:$0xf]
      %v740 = vld [vmem:[%s724 + $0x3c] sm:$0xf]
      %v741 = vld [vmem:[%s724 + $0x40] sm:$0xf]
      %v742 = vld [vmem:[%s724 + $0x44] sm:$0xf]
      %v743 = vld [vmem:[%s724 + $0x48] sm:$0xf]
      %v744 = vld [vmem:[%s724 + $0x4c] sm:$0xf]
      %v745 = vld [vmem:[%s724 + $0x50] sm:$0xf]
      %v746 = vld [vmem:[%s724 + $0x54] sm:$0xf]
      %v747 = vld [vmem:[%s724 + $0x58] sm:$0xf]
      %v748 = vld [vmem:[%s724 + $0x5c] sm:$0xf]
      %v749 = vld [vmem:[%s724 + $0x60] sm:$0xf]
      %v750 = vld [vmem:[%s724 + $0x64] sm:$0xf]
      %v751 = vld [vmem:[%s724 + $0x68] sm:$0xf]
      %v752 = vld [vmem:[%s724 + $0x6c] sm:$0xf]
      %v753 = vld [vmem:[%s724 + $0x70] sm:$0xf]
      %v754 = vld [vmem:[%s724 + $0x74] sm:$0xf]
      %v755 = vld [vmem:[%s724 + $0x78] sm:$0xf]
      %v756 = vld [vmem:[%s724 + $0x7c] sm:$0xf]
      %v759 = vrot.slane %v377, 1
      %v760 = vrot.slane %v378, 1
      %v795 = vunpack.c.l.b16 %v725
      %v796 = vunpack.c.l.b16 %v726
      %v797 = vunpack.c.l.b16 %v727
      %v798 = vunpack.c.l.b16 %v728
      %v799 = vunpack.c.l.b16 %v729
      %v800 = vunpack.c.l.b16 %v730
      %v801 = vunpack.c.l.b16 %v731
      %v802 = vunpack.c.l.b16 %v732
      %v803 = vunpack.c.l.b16 %v733
      %v804 = vunpack.c.l.b16 %v734
      %v805 = vunpack.c.l.b16 %v735
      %v806 = vunpack.c.l.b16 %v736
      %v807 = vunpack.c.l.b16 %v737
      %v808 = vunpack.c.l.b16 %v738
      %v809 = vunpack.c.l.b16 %v739
      %v810 = vunpack.c.l.b16 %v740
      %v811 = vunpack.c.l.b16 %v741
      %v812 = vunpack.c.l.b16 %v742
      %v813 = vunpack.c.l.b16 %v743
      %v814 = vunpack.c.l.b16 %v744
      %v815 = vunpack.c.l.b16 %v745
      %v816 = vunpack.c.l.b16 %v746
      %v817 = vunpack.c.l.b16 %v747
      %v818 = vunpack.c.l.b16 %v748
      %v819 = vunpack.c.l.b16 %v749
      %v820 = vunpack.c.l.b16 %v750
      %v821 = vunpack.c.l.b16 %v751
      %v822 = vunpack.c.l.b16 %v752
      %v823 = vunpack.c.l.b16 %v753
      %v824 = vunpack.c.l.b16 %v754
      %v825 = vunpack.c.l.b16 %v755
      %v826 = vunpack.c.l.b16 %v756
      %v827 = vpack.c.b16 %v796, %v795
      %v828 = vpack.c.b16 %v798, %v797
      %v829 = vpack.c.b16 %v800, %v799
      %v830 = vpack.c.b16 %v802, %v801
      %v831 = vpack.c.b16 %v804, %v803
      %v832 = vpack.c.b16 %v806, %v805
      %v833 = vpack.c.b16 %v808, %v807
      %v834 = vpack.c.b16 %v810, %v809
      %v835 = vpack.c.b16 %v812, %v811
      %v836 = vpack.c.b16 %v814, %v813
      %v837 = vpack.c.b16 %v816, %v815
      %v838 = vpack.c.b16 %v818, %v817
      %v839 = vpack.c.b16 %v820, %v819
      %v840 = vpack.c.b16 %v822, %v821
      %v841 = vpack.c.b16 %v824, %v823
      %v842 = vpack.c.b16 %v826, %v825
      %859 = vmatprep.subr.bf16.mxu0 0
      %860 = vmatpush1.bf16.msra.mxu0 %v827
      %861 = vmatprep.subr.bf16.mxu0 0
      %862 = vmatpush1.bf16.msra.mxu0 %v828
      %863 = vmatprep.subr.bf16.mxu0 0
      %864 = vmatpush1.bf16.msra.mxu0 %v829
      %865 = vmatprep.subr.bf16.mxu0 0
      %866 = vmatpush1.bf16.msra.mxu0 %v830
      %867 = vmatprep.subr.bf16.mxu0 0
      %868 = vmatpush1.bf16.msra.mxu0 %v831
      %869 = vmatprep.subr.bf16.mxu0 0
      %870 = vmatpush1.bf16.msra.mxu0 %v832
      %871 = vmatprep.subr.bf16.mxu0 0
      %872 = vmatpush1.bf16.msra.mxu0 %v833
      %873 = vmatprep.subr.bf16.mxu0 0
      %874 = vmatpush1.bf16.msra.mxu0 %v834
      %875 = vmatprep.subr.bf16.mxu0 0
      %876 = vmatpush1.bf16.msra.mxu0 %v835
      %877 = vmatprep.subr.bf16.mxu0 0
      %878 = vmatpush1.bf16.msra.mxu0 %v836
      %879 = vmatprep.subr.bf16.mxu0 0
      %880 = vmatpush1.bf16.msra.mxu0 %v837
      %881 = vmatprep.subr.bf16.mxu0 0
      %882 = vmatpush1.bf16.msra.mxu0 %v838
      %883 = vmatprep.subr.bf16.mxu0 0
      %884 = vmatpush1.bf16.msra.mxu0 %v839
      %885 = vmatprep.subr.bf16.mxu0 0
      %886 = vmatpush1.bf16.msra.mxu0 %v840
      %887 = vmatprep.subr.bf16.mxu0 0
      %888 = vmatpush1.bf16.msra.mxu0 %v841
      %889 = vmatprep.subr.bf16.mxu0 0
      %890 = vmatpush1.bf16.msra.mxu0 %v842
      %891 = vmatprep.mubr.bf16.mxu0 %v760
      %892 = vmatmul.mubr.bf16.gmra.mrb[0].mxu0 %v759
      %v893 = vpop.f32.mrb[0].mxu0
      %v894 = vadd.f32 0.0, %v893
      %v895 = vpop.f32.mrb[0].mxu0
      %v896 = vpop.f32.mrb[0].mxu0
      %v897 = vpop.f32.mrb[0].mxu0
      %898 = vdwg.mxu0
      %v899 = vadd.f32 %v719, %v894
      %s900 = scalar_lea.vmem %s3, 384
      %v901 = vld [vmem:[%s900] sm:$0xf]
      %v902 = vld [vmem:[%s900 + $0x4] sm:$0xf]
      %v903 = vld [vmem:[%s900 + $0x8] sm:$0xf]
      %v904 = vld [vmem:[%s900 + $0xc] sm:$0xf]
      %v905 = vld [vmem:[%s900 + $0x10] sm:$0xf]
      %v906 = vld [vmem:[%s900 + $0x14] sm:$0xf]
      %v907 = vld [vmem:[%s900 + $0x18] sm:$0xf]
      %v908 = vld [vmem:[%s900 + $0x1c] sm:$0xf]
      %v909 = vld [vmem:[%s900 + $0x20] sm:$0xf]
      %v910 = vld [vmem:[%s900 + $0x24] sm:$0xf]
      %v911 = vld [vmem:[%s900 + $0x28] sm:$0xf]
      %v912 = vld [vmem:[%s900 + $0x2c] sm:$0xf]
      %v913 = vld [vmem:[%s900 + $0x30] sm:$0xf]
      %v914 = vld [vmem:[%s900 + $0x34] sm:$0xf]
      %v915 = vld [vmem:[%s900 + $0x38] sm:$0xf]
      %v916 = vld [vmem:[%s900 + $0x3c] sm:$0xf]
      %v917 = vld [vmem:[%s900 + $0x40] sm:$0xf]
      %v918 = vld [vmem:[%s900 + $0x44] sm:$0xf]
      %v919 = vld [vmem:[%s900 + $0x48] sm:$0xf]
      %v920 = vld [vmem:[%s900 + $0x4c] sm:$0xf]
      %v921 = vld [vmem:[%s900 + $0x50] sm:$0xf]
      %v922 = vld [vmem:[%s900 + $0x54] sm:$0xf]
      %v923 = vld [vmem:[%s900 + $0x58] sm:$0xf]
      %v924 = vld [vmem:[%s900 + $0x5c] sm:$0xf]
      %v925 = vld [vmem:[%s900 + $0x60] sm:$0xf]
      %v926 = vld [vmem:[%s900 + $0x64] sm:$0xf]
      %v927 = vld [vmem:[%s900 + $0x68] sm:$0xf]
      %v928 = vld [vmem:[%s900 + $0x6c] sm:$0xf]
      %v929 = vld [vmem:[%s900 + $0x70] sm:$0xf]
      %v930 = vld [vmem:[%s900 + $0x74] sm:$0xf]
      %v931 = vld [vmem:[%s900 + $0x78] sm:$0xf]
      %v932 = vld [vmem:[%s900 + $0x7c] sm:$0xf]
      %v933 = vrot.slane %v445, 1
      %v934 = vrot.slane %v448, 1
      %v969 = vunpack.c.l.b16 %v901
      %v970 = vunpack.c.l.b16 %v902
      %v971 = vunpack.c.l.b16 %v903
      %v972 = vunpack.c.l.b16 %v904
      %v973 = vunpack.c.l.b16 %v905
      %v974 = vunpack.c.l.b16 %v906
      %v975 = vunpack.c.l.b16 %v907
      %v976 = vunpack.c.l.b16 %v908
      %v977 = vunpack.c.l.b16 %v909
      %v978 = vunpack.c.l.b16 %v910
      %v979 = vunpack.c.l.b16 %v911
      %v980 = vunpack.c.l.b16 %v912
      %v981 = vunpack.c.l.b16 %v913
      %v982 = vunpack.c.l.b16 %v914
      %v983 = vunpack.c.l.b16 %v915
      %v984 = vunpack.c.l.b16 %v916
      %v985 = vunpack.c.l.b16 %v917
      %v986 = vunpack.c.l.b16 %v918
      %v987 = vunpack.c.l.b16 %v919
      %v988 = vunpack.c.l.b16 %v920
      %v989 = vunpack.c.l.b16 %v921
      %v990 = vunpack.c.l.b16 %v922
      %v991 = vunpack.c.l.b16 %v923
      %v992 = vunpack.c.l.b16 %v924
      %v993 = vunpack.c.l.b16 %v925
      %v994 = vunpack.c.l.b16 %v926
      %v995 = vunpack.c.l.b16 %v927
      %v996 = vunpack.c.l.b16 %v928
      %v997 = vunpack.c.l.b16 %v929
      %v998 = vunpack.c.l.b16 %v930
      %v999 = vunpack.c.l.b16 %v931
      %v1000 = vunpack.c.l.b16 %v932
      %v1001 = vpack.c.b16 %v970, %v969
      %v1002 = vpack.c.b16 %v972, %v971
      %v1003 = vpack.c.b16 %v974, %v973
      %v1004 = vpack.c.b16 %v976, %v975
      %v1005 = vpack.c.b16 %v978, %v977
      %v1006 = vpack.c.b16 %v980, %v979
      %v1007 = vpack.c.b16 %v982, %v981
      %v1008 = vpack.c.b16 %v984, %v983
      %v1009 = vpack.c.b16 %v986, %v985
      %v1010 = vpack.c.b16 %v988, %v987
      %v1011 = vpack.c.b16 %v990, %v989
      %v1012 = vpack.c.b16 %v992, %v991
      %v1013 = vpack.c.b16 %v994, %v993
      %v1014 = vpack.c.b16 %v996, %v995
      %v1015 = vpack.c.b16 %v998, %v997
      %v1016 = vpack.c.b16 %v1000, %v999
      %1033 = vmatprep.subr.bf16.mxu0 0
      %1034 = vmatpush1.bf16.msra.mxu0 %v1001
      %1035 = vmatprep.subr.bf16.mxu0 0
      %1036 = vmatpush1.bf16.msra.mxu0 %v1002
      %1037 = vmatprep.subr.bf16.mxu0 0
      %1038 = vmatpush1.bf16.msra.mxu0 %v1003
      %1039 = vmatprep.subr.bf16.mxu0 0
      %1040 = vmatpush1.bf16.msra.mxu0 %v1004
      %1041 = vmatprep.subr.bf16.mxu0 0
      %1042 = vmatpush1.bf16.msra.mxu0 %v1005
      %1043 = vmatprep.subr.bf16.mxu0 0
      %1044 = vmatpush1.bf16.msra.mxu0 %v1006
      %1045 = vmatprep.subr.bf16.mxu0 0
      %1046 = vmatpush1.bf16.msra.mxu0 %v1007
      %1047 = vmatprep.subr.bf16.mxu0 0
      %1048 = vmatpush1.bf16.msra.mxu0 %v1008
      %1049 = vmatprep.subr.bf16.mxu0 0
      %1050 = vmatpush1.bf16.msra.mxu0 %v1009
      %1051 = vmatprep.subr.bf16.mxu0 0
      %1052 = vmatpush1.bf16.msra.mxu0 %v1010
      %1053 = vmatprep.subr.bf16.mxu0 0
      %1054 = vmatpush1.bf16.msra.mxu0 %v1011
      %1055 = vmatprep.subr.bf16.mxu0 0
      %1056 = vmatpush1.bf16.msra.mxu0 %v1012
      %1057 = vmatprep.subr.bf16.mxu0 0
      %1058 = vmatpush1.bf16.msra.mxu0 %v1013
      %1059 = vmatprep.subr.bf16.mxu0 0
      %1060 = vmatpush1.bf16.msra.mxu0 %v1014
      %1061 = vmatprep.subr.bf16.mxu0 0
      %1062 = vmatpush1.bf16.msra.mxu0 %v1015
      %1063 = vmatprep.subr.bf16.mxu0 0
      %1064 = vmatpush1.bf16.msra.mxu0 %v1016
      %1065 = vmatprep.mubr.bf16.mxu0 %v934
      %1066 = vmatmul.mubr.bf16.gmra.mrb[0].mxu0 %v933
      %v1067 = vpop.f32.mrb[0].mxu0
      %v1068 = vadd.f32 0.0, %v1067
      %v1069 = vpop.f32.mrb[0].mxu0
      %v1070 = vpop.f32.mrb[0].mxu0
      %v1071 = vpop.f32.mrb[0].mxu0
      %1072 = vdwg.mxu0
      %v1073 = vadd.f32 %v899, %v1068
      %s1074 = scalar_lea.vmem %s3, 512
      %v1075 = vld [vmem:[%s1074] sm:$0xf]
      %v1076 = vld [vmem:[%s1074 + $0x4] sm:$0xf]
      %v1077 = vld [vmem:[%s1074 + $0x8] sm:$0xf]
      %v1078 = vld [vmem:[%s1074 + $0xc] sm:$0xf]
      %v1079 = vld [vmem:[%s1074 + $0x10] sm:$0xf]
      %v1080 = vld [vmem:[%s1074 + $0x14] sm:$0xf]
      %v1081 = vld [vmem:[%s1074 + $0x18] sm:$0xf]
      %v1082 = vld [vmem:[%s1074 + $0x1c] sm:$0xf]
      %v1083 = vld [vmem:[%s1074 + $0x20] sm:$0xf]
      %v1084 = vld [vmem:[%s1074 + $0x24] sm:$0xf]
      %v1085 = vld [vmem:[%s1074 + $0x28] sm:$0xf]
      %v1086 = vld [vmem:[%s1074 + $0x2c] sm:$0xf]
      %v1087 = vld [vmem:[%s1074 + $0x30] sm:$0xf]
      %v1088 = vld [vmem:[%s1074 + $0x34] sm:$0xf]
      %v1089 = vld [vmem:[%s1074 + $0x38] sm:$0xf]
      %v1090 = vld [vmem:[%s1074 + $0x3c] sm:$0xf]
      %v1091 = vld [vmem:[%s1074 + $0x40] sm:$0xf]
      %v1092 = vld [vmem:[%s1074 + $0x44] sm:$0xf]
      %v1093 = vld [vmem:[%s1074 + $0x48] sm:$0xf]
      %v1094 = vld [vmem:[%s1074 + $0x4c] sm:$0xf]
      %v1095 = vld [vmem:[%s1074 + $0x50] sm:$0xf]
      %v1096 = vld [vmem:[%s1074 + $0x54] sm:$0xf]
      %v1097 = vld [vmem:[%s1074 + $0x58] sm:$0xf]
      %v1098 = vld [vmem:[%s1074 + $0x5c] sm:$0xf]
      %v1099 = vld [vmem:[%s1074 + $0x60] sm:$0xf]
      %v1100 = vld [vmem:[%s1074 + $0x64] sm:$0xf]
      %v1101 = vld [vmem:[%s1074 + $0x68] sm:$0xf]
      %v1102 = vld [vmem:[%s1074 + $0x6c] sm:$0xf]
      %v1103 = vld [vmem:[%s1074 + $0x70] sm:$0xf]
      %v1104 = vld [vmem:[%s1074 + $0x74] sm:$0xf]
      %v1105 = vld [vmem:[%s1074 + $0x78] sm:$0xf]
      %v1106 = vld [vmem:[%s1074 + $0x7c] sm:$0xf]
      %v1107 = vrot.slane %v377, 2
      %v1108 = vrot.slane %v378, 2
      %v1143 = vunpack.c.l.b16 %v1075
      %v1144 = vunpack.c.l.b16 %v1076
      %v1145 = vunpack.c.l.b16 %v1077
      %v1146 = vunpack.c.l.b16 %v1078
      %v1147 = vunpack.c.l.b16 %v1079
      %v1148 = vunpack.c.l.b16 %v1080
      %v1149 = vunpack.c.l.b16 %v1081
      %v1150 = vunpack.c.l.b16 %v1082
      %v1151 = vunpack.c.l.b16 %v1083
      %v1152 = vunpack.c.l.b16 %v1084
      %v1153 = vunpack.c.l.b16 %v1085
      %v1154 = vunpack.c.l.b16 %v1086
      %v1155 = vunpack.c.l.b16 %v1087
      %v1156 = vunpack.c.l.b16 %v1088
      %v1157 = vunpack.c.l.b16 %v1089
      %v1158 = vunpack.c.l.b16 %v1090
      %v1159 = vunpack.c.l.b16 %v1091
      %v1160 = vunpack.c.l.b16 %v1092
      %v1161 = vunpack.c.l.b16 %v1093
      %v1162 = vunpack.c.l.b16 %v1094
      %v1163 = vunpack.c.l.b16 %v1095
      %v1164 = vunpack.c.l.b16 %v1096
      %v1165 = vunpack.c.l.b16 %v1097
      %v1166 = vunpack.c.l.b16 %v1098
      %v1167 = vunpack.c.l.b16 %v1099
      %v1168 = vunpack.c.l.b16 %v1100
      %v1169 = vunpack.c.l.b16 %v1101
      %v1170 = vunpack.c.l.b16 %v1102
      %v1171 = vunpack.c.l.b16 %v1103
      %v1172 = vunpack.c.l.b16 %v1104
      %v1173 = vunpack.c.l.b16 %v1105
      %v1174 = vunpack.c.l.b16 %v1106
      %v1175 = vpack.c.b16 %v1144, %v1143
      %v1176 = vpack.c.b16 %v1146, %v1145
      %v1177 = vpack.c.b16 %v1148, %v1147
      %v1178 = vpack.c.b16 %v1150, %v1149
      %v1179 = vpack.c.b16 %v1152, %v1151
      %v1180 = vpack.c.b16 %v1154, %v1153
      %v1181 = vpack.c.b16 %v1156, %v1155
      %v1182 = vpack.c.b16 %v1158, %v1157
      %v1183 = vpack.c.b16 %v1160, %v1159
      %v1184 = vpack.c.b16 %v1162, %v1161
      %v1185 = vpack.c.b16 %v1164, %v1163
      %v1186 = vpack.c.b16 %v1166, %v1165
      %v1187 = vpack.c.b16 %v1168, %v1167
      %v1188 = vpack.c.b16 %v1170, %v1169
      %v1189 = vpack.c.b16 %v1172, %v1171
      %v1190 = vpack.c.b16 %v1174, %v1173
      %1207 = vmatprep.subr.bf16.mxu0 0
      %1208 = vmatpush1.bf16.msra.mxu0 %v1175
      %1209 = vmatprep.subr.bf16.mxu0 0
      %1210 = vmatpush1.bf16.msra.mxu0 %v1176
      %1211 = vmatprep.subr.bf16.mxu0 0
      %1212 = vmatpush1.bf16.msra.mxu0 %v1177
      %1213 = vmatprep.subr.bf16.mxu0 0
      %1214 = vmatpush1.bf16.msra.mxu0 %v1178
      %1215 = vmatprep.subr.bf16.mxu0 0
      %1216 = vmatpush1.bf16.msra.mxu0 %v1179
      %1217 = vmatprep.subr.bf16.mxu0 0
      %1218 = vmatpush1.bf16.msra.mxu0 %v1180
      %1219 = vmatprep.subr.bf16.mxu0 0
      %1220 = vmatpush1.bf16.msra.mxu0 %v1181
      %1221 = vmatprep.subr.bf16.mxu0 0
      %1222 = vmatpush1.bf16.msra.mxu0 %v1182
      %1223 = vmatprep.subr.bf16.mxu0 0
      %1224 = vmatpush1.bf16.msra.mxu0 %v1183
      %1225 = vmatprep.subr.bf16.mxu0 0
      %1226 = vmatpush1.bf16.msra.mxu0 %v1184
      %1227 = vmatprep.subr.bf16.mxu0 0
      %1228 = vmatpush1.bf16.msra.mxu0 %v1185
      %1229 = vmatprep.subr.bf16.mxu0 0
      %1230 = vmatpush1.bf16.msra.mxu0 %v1186
      %1231 = vmatprep.subr.bf16.mxu0 0
      %1232 = vmatpush1.bf16.msra.mxu0 %v1187
      %1233 = vmatprep.subr.bf16.mxu0 0
      %1234 = vmatpush1.bf16.msra.mxu0 %v1188
      %1235 = vmatprep.subr.bf16.mxu0 0
      %1236 = vmatpush1.bf16.msra.mxu0 %v1189
      %1237 = vmatprep.subr.bf16.mxu0 0
      %1238 = vmatpush1.bf16.msra.mxu0 %v1190
      %1239 = vmatprep.mubr.bf16.mxu0 %v1108
      %1240 = vmatmul.mubr.bf16.gmra.mrb[0].mxu0 %v1107
      %v1241 = vpop.f32.mrb[0].mxu0
      %v1242 = vadd.f32 0.0, %v1241
      %v1243 = vpop.f32.mrb[0].mxu0
      %v1244 = vpop.f32.mrb[0].mxu0
      %v1245 = vpop.f32.mrb[0].mxu0
      %1246 = vdwg.mxu0
      %v1247 = vadd.f32 %v1073, %v1242
      %s1248 = scalar_lea.vmem %s3, 640
      %v1249 = vld [vmem:[%s1248] sm:$0xf]
      %v1250 = vld [vmem:[%s1248 + $0x4] sm:$0xf]
      %v1251 = vld [vmem:[%s1248 + $0x8] sm:$0xf]
      %v1252 = vld [vmem:[%s1248 + $0xc] sm:$0xf]
      %v1253 = vld [vmem:[%s1248 + $0x10] sm:$0xf]
      %v1254 = vld [vmem:[%s1248 + $0x14] sm:$0xf]
      %v1255 = vld [vmem:[%s1248 + $0x18] sm:$0xf]
      %v1256 = vld [vmem:[%s1248 + $0x1c] sm:$0xf]
      %v1257 = vld [vmem:[%s1248 + $0x20] sm:$0xf]
      %v1258 = vld [vmem:[%s1248 + $0x24] sm:$0xf]
      %v1259 = vld [vmem:[%s1248 + $0x28] sm:$0xf]
      %v1260 = vld [vmem:[%s1248 + $0x2c] sm:$0xf]
      %v1261 = vld [vmem:[%s1248 + $0x30] sm:$0xf]
      %v1262 = vld [vmem:[%s1248 + $0x34] sm:$0xf]
      %v1263 = vld [vmem:[%s1248 + $0x38] sm:$0xf]
      %v1264 = vld [vmem:[%s1248 + $0x3c] sm:$0xf]
      %v1265 = vld [vmem:[%s1248 + $0x40] sm:$0xf]
      %v1266 = vld [vmem:[%s1248 + $0x44] sm:$0xf]
      %v1267 = vld [vmem:[%s1248 + $0x48] sm:$0xf]
      %v1268 = vld [vmem:[%s1248 + $0x4c] sm:$0xf]
      %v1269 = vld [vmem:[%s1248 + $0x50] sm:$0xf]
      %v1270 = vld [vmem:[%s1248 + $0x54] sm:$0xf]
      %v1271 = vld [vmem:[%s1248 + $0x58] sm:$0xf]
      %v1272 = vld [vmem:[%s1248 + $0x5c] sm:$0xf]
      %v1273 = vld [vmem:[%s1248 + $0x60] sm:$0xf]
      %v1274 = vld [vmem:[%s1248 + $0x64] sm:$0xf]
      %v1275 = vld [vmem:[%s1248 + $0x68] sm:$0xf]
      %v1276 = vld [vmem:[%s1248 + $0x6c] sm:$0xf]
      %v1277 = vld [vmem:[%s1248 + $0x70] sm:$0xf]
      %v1278 = vld [vmem:[%s1248 + $0x74] sm:$0xf]
      %v1279 = vld [vmem:[%s1248 + $0x78] sm:$0xf]
      %v1280 = vld [vmem:[%s1248 + $0x7c] sm:$0xf]
      %v1281 = vrot.slane %v445, 2
      %v1282 = vrot.slane %v448, 2
      %v1317 = vunpack.c.l.b16 %v1249
      %v1318 = vunpack.c.l.b16 %v1250
      %v1319 = vunpack.c.l.b16 %v1251
      %v1320 = vunpack.c.l.b16 %v1252
      %v1321 = vunpack.c.l.b16 %v1253
      %v1322 = vunpack.c.l.b16 %v1254
      %v1323 = vunpack.c.l.b16 %v1255
      %v1324 = vunpack.c.l.b16 %v1256
      %v1325 = vunpack.c.l.b16 %v1257
      %v1326 = vunpack.c.l.b16 %v1258
      %v1327 = vunpack.c.l.b16 %v1259
      %v1328 = vunpack.c.l.b16 %v1260
      %v1329 = vunpack.c.l.b16 %v1261
      %v1330 = vunpack.c.l.b16 %v1262
      %v1331 = vunpack.c.l.b16 %v1263
      %v1332 = vunpack.c.l.b16 %v1264
      %v1333 = vunpack.c.l.b16 %v1265
      %v1334 = vunpack.c.l.b16 %v1266
      %v1335 = vunpack.c.l.b16 %v1267
      %v1336 = vunpack.c.l.b16 %v1268
      %v1337 = vunpack.c.l.b16 %v1269
      %v1338 = vunpack.c.l.b16 %v1270
      %v1339 = vunpack.c.l.b16 %v1271
      %v1340 = vunpack.c.l.b16 %v1272
      %v1341 = vunpack.c.l.b16 %v1273
      %v1342 = vunpack.c.l.b16 %v1274
      %v1343 = vunpack.c.l.b16 %v1275
      %v1344 = vunpack.c.l.b16 %v1276
      %v1345 = vunpack.c.l.b16 %v1277
      %v1346 = vunpack.c.l.b16 %v1278
      %v1347 = vunpack.c.l.b16 %v1279
      %v1348 = vunpack.c.l.b16 %v1280
      %v1349 = vpack.c.b16 %v1318, %v1317
      %v1350 = vpack.c.b16 %v1320, %v1319
      %v1351 = vpack.c.b16 %v1322, %v1321
      %v1352 = vpack.c.b16 %v1324, %v1323
      %v1353 = vpack.c.b16 %v1326, %v1325
      %v1354 = vpack.c.b16 %v1328, %v1327
      %v1355 = vpack.c.b16 %v1330, %v1329
      %v1356 = vpack.c.b16 %v1332, %v1331
      %v1357 = vpack.c.b16 %v1334, %v1333
      %v1358 = vpack.c.b16 %v1336, %v1335
      %v1359 = vpack.c.b16 %v1338, %v1337
      %v1360 = vpack.c.b16 %v1340, %v1339
      %v1361 = vpack.c.b16 %v1342, %v1341
      %v1362 = vpack.c.b16 %v1344, %v1343
      %v1363 = vpack.c.b16 %v1346, %v1345
      %v1364 = vpack.c.b16 %v1348, %v1347
      %1381 = vmatprep.subr.bf16.mxu0 0
      %1382 = vmatpush1.bf16.msra.mxu0 %v1349
      %1383 = vmatprep.subr.bf16.mxu0 0
      %1384 = vmatpush1.bf16.msra.mxu0 %v1350
      %1385 = vmatprep.subr.bf16.mxu0 0
      %1386 = vmatpush1.bf16.msra.mxu0 %v1351
      %1387 = vmatprep.subr.bf16.mxu0 0
      %1388 = vmatpush1.bf16.msra.mxu0 %v1352
      %1389 = vmatprep.subr.bf16.mxu0 0
      %1390 = vmatpush1.bf16.msra.mxu0 %v1353
      %1391 = vmatprep.subr.bf16.mxu0 0
      %1392 = vmatpush1.bf16.msra.mxu0 %v1354
      %1393 = vmatprep.subr.bf16.mxu0 0
      %1394 = vmatpush1.bf16.msra.mxu0 %v1355
      %1395 = vmatprep.subr.bf16.mxu0 0
      %1396 = vmatpush1.bf16.msra.mxu0 %v1356
      %1397 = vmatprep.subr.bf16.mxu0 0
      %1398 = vmatpush1.bf16.msra.mxu0 %v1357
      %1399 = vmatprep.subr.bf16.mxu0 0
      %1400 = vmatpush1.bf16.msra.mxu0 %v1358
      %1401 = vmatprep.subr.bf16.mxu0 0
      %1402 = vmatpush1.bf16.msra.mxu0 %v1359
      %1403 = vmatprep.subr.bf16.mxu0 0
      %1404 = vmatpush1.bf16.msra.mxu0 %v1360
      %1405 = vmatprep.subr.bf16.mxu0 0
      %1406 = vmatpush1.bf16.msra.mxu0 %v1361
      %1407 = vmatprep.subr.bf16.mxu0 0
      %1408 = vmatpush1.bf16.msra.mxu0 %v1362
      %1409 = vmatprep.subr.bf16.mxu0 0
      %1410 = vmatpush1.bf16.msra.mxu0 %v1363
      %1411 = vmatprep.subr.bf16.mxu0 0
      %1412 = vmatpush1.bf16.msra.mxu0 %v1364
      %1413 = vmatprep.mubr.bf16.mxu0 %v1282
      %1414 = vmatmul.mubr.bf16.gmra.mrb[0].mxu0 %v1281
      %v1415 = vpop.f32.mrb[0].mxu0
      %v1416 = vadd.f32 0.0, %v1415
      %v1417 = vpop.f32.mrb[0].mxu0
      %v1418 = vpop.f32.mrb[0].mxu0
      %v1419 = vpop.f32.mrb[0].mxu0
      %1420 = vdwg.mxu0
      %v1421 = vadd.f32 %v1247, %v1416
      %s1422 = scalar_lea.vmem %s3, 768
      %v1423 = vld [vmem:[%s1422] sm:$0xf]
      %v1424 = vld [vmem:[%s1422 + $0x4] sm:$0xf]
      %v1425 = vld [vmem:[%s1422 + $0x8] sm:$0xf]
      %v1426 = vld [vmem:[%s1422 + $0xc] sm:$0xf]
      %v1427 = vld [vmem:[%s1422 + $0x10] sm:$0xf]
      %v1428 = vld [vmem:[%s1422 + $0x14] sm:$0xf]
      %v1429 = vld [vmem:[%s1422 + $0x18] sm:$0xf]
      %v1430 = vld [vmem:[%s1422 + $0x1c] sm:$0xf]
      %v1431 = vld [vmem:[%s1422 + $0x20] sm:$0xf]
      %v1432 = vld [vmem:[%s1422 + $0x24] sm:$0xf]
      %v1433 = vld [vmem:[%s1422 + $0x28] sm:$0xf]
      %v1434 = vld [vmem:[%s1422 + $0x2c] sm:$0xf]
      %v1435 = vld [vmem:[%s1422 + $0x30] sm:$0xf]
      %v1436 = vld [vmem:[%s1422 + $0x34] sm:$0xf]
      %v1437 = vld [vmem:[%s1422 + $0x38] sm:$0xf]
      %v1438 = vld [vmem:[%s1422 + $0x3c] sm:$0xf]
      %v1439 = vld [vmem:[%s1422 + $0x40] sm:$0xf]
      %v1440 = vld [vmem:[%s1422 + $0x44] sm:$0xf]
      %v1441 = vld [vmem:[%s1422 + $0x48] sm:$0xf]
      %v1442 = vld [vmem:[%s1422 + $0x4c] sm:$0xf]
      %v1443 = vld [vmem:[%s1422 + $0x50] sm:$0xf]
      %v1444 = vld [vmem:[%s1422 + $0x54] sm:$0xf]
      %v1445 = vld [vmem:[%s1422 + $0x58] sm:$0xf]
      %v1446 = vld [vmem:[%s1422 + $0x5c] sm:$0xf]
      %v1447 = vld [vmem:[%s1422 + $0x60] sm:$0xf]
      %v1448 = vld [vmem:[%s1422 + $0x64] sm:$0xf]
      %v1449 = vld [vmem:[%s1422 + $0x68] sm:$0xf]
      %v1450 = vld [vmem:[%s1422 + $0x6c] sm:$0xf]
      %v1451 = vld [vmem:[%s1422 + $0x70] sm:$0xf]
      %v1452 = vld [vmem:[%s1422 + $0x74] sm:$0xf]
      %v1453 = vld [vmem:[%s1422 + $0x78] sm:$0xf]
      %v1454 = vld [vmem:[%s1422 + $0x7c] sm:$0xf]
      %v1455 = vrot.slane %v377, 3
      %v1456 = vrot.slane %v378, 3
      %v1491 = vunpack.c.l.b16 %v1423
      %v1492 = vunpack.c.l.b16 %v1424
      %v1493 = vunpack.c.l.b16 %v1425
      %v1494 = vunpack.c.l.b16 %v1426
      %v1495 = vunpack.c.l.b16 %v1427
      %v1496 = vunpack.c.l.b16 %v1428
      %v1497 = vunpack.c.l.b16 %v1429
      %v1498 = vunpack.c.l.b16 %v1430
      %v1499 = vunpack.c.l.b16 %v1431
      %v1500 = vunpack.c.l.b16 %v1432
      %v1501 = vunpack.c.l.b16 %v1433
      %v1502 = vunpack.c.l.b16 %v1434
      %v1503 = vunpack.c.l.b16 %v1435
      %v1504 = vunpack.c.l.b16 %v1436
      %v1505 = vunpack.c.l.b16 %v1437
      %v1506 = vunpack.c.l.b16 %v1438
      %v1507 = vunpack.c.l.b16 %v1439
      %v1508 = vunpack.c.l.b16 %v1440
      %v1509 = vunpack.c.l.b16 %v1441
      %v1510 = vunpack.c.l.b16 %v1442
      %v1511 = vunpack.c.l.b16 %v1443
      %v1512 = vunpack.c.l.b16 %v1444
      %v1513 = vunpack.c.l.b16 %v1445
      %v1514 = vunpack.c.l.b16 %v1446
      %v1515 = vunpack.c.l.b16 %v1447
      %v1516 = vunpack.c.l.b16 %v1448
      %v1517 = vunpack.c.l.b16 %v1449
      %v1518 = vunpack.c.l.b16 %v1450
      %v1519 = vunpack.c.l.b16 %v1451
      %v1520 = vunpack.c.l.b16 %v1452
      %v1521 = vunpack.c.l.b16 %v1453
      %v1522 = vunpack.c.l.b16 %v1454
      %v1523 = vpack.c.b16 %v1492, %v1491
      %v1524 = vpack.c.b16 %v1494, %v1493
      %v1525 = vpack.c.b16 %v1496, %v1495
      %v1526 = vpack.c.b16 %v1498, %v1497
      %v1527 = vpack.c.b16 %v1500, %v1499
      %v1528 = vpack.c.b16 %v1502, %v1501
      %v1529 = vpack.c.b16 %v1504, %v1503
      %v1530 = vpack.c.b16 %v1506, %v1505
      %v1531 = vpack.c.b16 %v1508, %v1507
      %v1532 = vpack.c.b16 %v1510, %v1509
      %v1533 = vpack.c.b16 %v1512, %v1511
      %v1534 = vpack.c.b16 %v1514, %v1513
      %v1535 = vpack.c.b16 %v1516, %v1515
      %v1536 = vpack.c.b16 %v1518, %v1517
      %v1537 = vpack.c.b16 %v1520, %v1519
      %v1538 = vpack.c.b16 %v1522, %v1521
      %1555 = vmatprep.subr.bf16.mxu0 0
      %1556 = vmatpush1.bf16.msra.mxu0 %v1523
      %1557 = vmatprep.subr.bf16.mxu0 0
      %1558 = vmatpush1.bf16.msra.mxu0 %v1524
      %1559 = vmatprep.subr.bf16.mxu0 0
      %1560 = vmatpush1.bf16.msra.mxu0 %v1525
      %1561 = vmatprep.subr.bf16.mxu0 0
      %1562 = vmatpush1.bf16.msra.mxu0 %v1526
      %1563 = vmatprep.subr.bf16.mxu0 0
      %1564 = vmatpush1.bf16.msra.mxu0 %v1527
      %1565 = vmatprep.subr.bf16.mxu0 0
      %1566 = vmatpush1.bf16.msra.mxu0 %v1528
      %1567 = vmatprep.subr.bf16.mxu0 0
      %1568 = vmatpush1.bf16.msra.mxu0 %v1529
      %1569 = vmatprep.subr.bf16.mxu0 0
      %1570 = vmatpush1.bf16.msra.mxu0 %v1530
      %1571 = vmatprep.subr.bf16.mxu0 0
      %1572 = vmatpush1.bf16.msra.mxu0 %v1531
      %1573 = vmatprep.subr.bf16.mxu0 0
      %1574 = vmatpush1.bf16.msra.mxu0 %v1532
      %1575 = vmatprep.subr.bf16.mxu0 0
      %1576 = vmatpush1.bf16.msra.mxu0 %v1533
      %1577 = vmatprep.subr.bf16.mxu0 0
      %1578 = vmatpush1.bf16.msra.mxu0 %v1534
      %1579 = vmatprep.subr.bf16.mxu0 0
      %1580 = vmatpush1.bf16.msra.mxu0 %v1535
      %1581 = vmatprep.subr.bf16.mxu0 0
      %1582 = vmatpush1.bf16.msra.mxu0 %v1536
      %1583 = vmatprep.subr.bf16.mxu0 0
      %1584 = vmatpush1.bf16.msra.mxu0 %v1537
      %1585 = vmatprep.subr.bf16.mxu0 0
      %1586 = vmatpush1.bf16.msra.mxu0 %v1538
      %1587 = vmatprep.mubr.bf16.mxu0 %v1456
      %1588 = vmatmul.mubr.bf16.gmra.mrb[0].mxu0 %v1455
      %v1589 = vpop.f32.mrb[0].mxu0
      %v1590 = vadd.f32 0.0, %v1589
      %v1591 = vpop.f32.mrb[0].mxu0
      %v1592 = vpop.f32.mrb[0].mxu0
      %v1593 = vpop.f32.mrb[0].mxu0
      %1594 = vdwg.mxu0
      %v1595 = vadd.f32 %v1421, %v1590
      %s1596 = scalar_lea.vmem %s3, 896
      %v1597 = vld [vmem:[%s1596] sm:$0xf]
      %v1598 = vld [vmem:[%s1596 + $0x4] sm:$0xf]
      %v1599 = vld [vmem:[%s1596 + $0x8] sm:$0xf]
      %v1600 = vld [vmem:[%s1596 + $0xc] sm:$0xf]
      %v1601 = vld [vmem:[%s1596 + $0x10] sm:$0xf]
      %v1602 = vld [vmem:[%s1596 + $0x14] sm:$0xf]
      %v1603 = vld [vmem:[%s1596 + $0x18] sm:$0xf]
      %v1604 = vld [vmem:[%s1596 + $0x1c] sm:$0xf]
      %v1605 = vld [vmem:[%s1596 + $0x20] sm:$0xf]
      %v1606 = vld [vmem:[%s1596 + $0x24] sm:$0xf]
      %v1607 = vld [vmem:[%s1596 + $0x28] sm:$0xf]
      %v1608 = vld [vmem:[%s1596 + $0x2c] sm:$0xf]
      %v1609 = vld [vmem:[%s1596 + $0x30] sm:$0xf]
      %v1610 = vld [vmem:[%s1596 + $0x34] sm:$0xf]
      %v1611 = vld [vmem:[%s1596 + $0x38] sm:$0xf]
      %v1612 = vld [vmem:[%s1596 + $0x3c] sm:$0xf]
      %v1613 = vld [vmem:[%s1596 + $0x40] sm:$0xf]
      %v1614 = vld [vmem:[%s1596 + $0x44] sm:$0xf]
      %v1615 = vld [vmem:[%s1596 + $0x48] sm:$0xf]
      %v1616 = vld [vmem:[%s1596 + $0x4c] sm:$0xf]
      %v1617 = vld [vmem:[%s1596 + $0x50] sm:$0xf]
      %v1618 = vld [vmem:[%s1596 + $0x54] sm:$0xf]
      %v1619 = vld [vmem:[%s1596 + $0x58] sm:$0xf]
      %v1620 = vld [vmem:[%s1596 + $0x5c] sm:$0xf]
      %v1621 = vld [vmem:[%s1596 + $0x60] sm:$0xf]
      %v1622 = vld [vmem:[%s1596 + $0x64] sm:$0xf]
      %v1623 = vld [vmem:[%s1596 + $0x68] sm:$0xf]
      %v1624 = vld [vmem:[%s1596 + $0x6c] sm:$0xf]
      %v1625 = vld [vmem:[%s1596 + $0x70] sm:$0xf]
      %v1626 = vld [vmem:[%s1596 + $0x74] sm:$0xf]
      %v1627 = vld [vmem:[%s1596 + $0x78] sm:$0xf]
      %v1628 = vld [vmem:[%s1596 + $0x7c] sm:$0xf]
      %v1629 = vrot.slane %v445, 3
      %v1630 = vrot.slane %v448, 3
      %v1665 = vunpack.c.l.b16 %v1597
      %v1666 = vunpack.c.l.b16 %v1598
      %v1667 = vunpack.c.l.b16 %v1599
      %v1668 = vunpack.c.l.b16 %v1600
      %v1669 = vunpack.c.l.b16 %v1601
      %v1670 = vunpack.c.l.b16 %v1602
      %v1671 = vunpack.c.l.b16 %v1603
      %v1672 = vunpack.c.l.b16 %v1604
      %v1673 = vunpack.c.l.b16 %v1605
      %v1674 = vunpack.c.l.b16 %v1606
      %v1675 = vunpack.c.l.b16 %v1607
      %v1676 = vunpack.c.l.b16 %v1608
      %v1677 = vunpack.c.l.b16 %v1609
      %v1678 = vunpack.c.l.b16 %v1610
      %v1679 = vunpack.c.l.b16 %v1611
      %v1680 = vunpack.c.l.b16 %v1612
      %v1681 = vunpack.c.l.b16 %v1613
      %v1682 = vunpack.c.l.b16 %v1614
      %v1683 = vunpack.c.l.b16 %v1615
      %v1684 = vunpack.c.l.b16 %v1616
      %v1685 = vunpack.c.l.b16 %v1617
      %v1686 = vunpack.c.l.b16 %v1618
      %v1687 = vunpack.c.l.b16 %v1619
      %v1688 = vunpack.c.l.b16 %v1620
      %v1689 = vunpack.c.l.b16 %v1621
      %v1690 = vunpack.c.l.b16 %v1622
      %v1691 = vunpack.c.l.b16 %v1623
      %v1692 = vunpack.c.l.b16 %v1624
      %v1693 = vunpack.c.l.b16 %v1625
      %v1694 = vunpack.c.l.b16 %v1626
      %v1695 = vunpack.c.l.b16 %v1627
      %v1696 = vunpack.c.l.b16 %v1628
      %v1697 = vpack.c.b16 %v1666, %v1665
      %v1698 = vpack.c.b16 %v1668, %v1667
      %v1699 = vpack.c.b16 %v1670, %v1669
      %v1700 = vpack.c.b16 %v1672, %v1671
      %v1701 = vpack.c.b16 %v1674, %v1673
      %v1702 = vpack.c.b16 %v1676, %v1675
      %v1703 = vpack.c.b16 %v1678, %v1677
      %v1704 = vpack.c.b16 %v1680, %v1679
      %v1705 = vpack.c.b16 %v1682, %v1681
      %v1706 = vpack.c.b16 %v1684, %v1683
      %v1707 = vpack.c.b16 %v1686, %v1685
      %v1708 = vpack.c.b16 %v1688, %v1687
      %v1709 = vpack.c.b16 %v1690, %v1689
      %v1710 = vpack.c.b16 %v1692, %v1691
      %v1711 = vpack.c.b16 %v1694, %v1693
      %v1712 = vpack.c.b16 %v1696, %v1695
      %1729 = vmatprep.subr.bf16.mxu0 0
      %1730 = vmatpush1.bf16.msra.mxu0 %v1697
      %1731 = vmatprep.subr.bf16.mxu0 0
      %1732 = vmatpush1.bf16.msra.mxu0 %v1698
      %1733 = vmatprep.subr.bf16.mxu0 0
      %1734 = vmatpush1.bf16.msra.mxu0 %v1699
      %1735 = vmatprep.subr.bf16.mxu0 0
      %1736 = vmatpush1.bf16.msra.mxu0 %v1700
      %1737 = vmatprep.subr.bf16.mxu0 0
      %1738 = vmatpush1.bf16.msra.mxu0 %v1701
      %1739 = vmatprep.subr.bf16.mxu0 0
      %1740 = vmatpush1.bf16.msra.mxu0 %v1702
      %1741 = vmatprep.subr.bf16.mxu0 0
      %1742 = vmatpush1.bf16.msra.mxu0 %v1703
      %1743 = vmatprep.subr.bf16.mxu0 0
      %1744 = vmatpush1.bf16.msra.mxu0 %v1704
      %1745 = vmatprep.subr.bf16.mxu0 0
      %1746 = vmatpush1.bf16.msra.mxu0 %v1705
      %1747 = vmatprep.subr.bf16.mxu0 0
      %1748 = vmatpush1.bf16.msra.mxu0 %v1706
      %1749 = vmatprep.subr.bf16.mxu0 0
      %1750 = vmatpush1.bf16.msra.mxu0 %v1707
      %1751 = vmatprep.subr.bf16.mxu0 0
      %1752 = vmatpush1.bf16.msra.mxu0 %v1708
      %1753 = vmatprep.subr.bf16.mxu0 0
      %1754 = vmatpush1.bf16.msra.mxu0 %v1709
      %1755 = vmatprep.subr.bf16.mxu0 0
      %1756 = vmatpush1.bf16.msra.mxu0 %v1710
      %1757 = vmatprep.subr.bf16.mxu0 0
      %1758 = vmatpush1.bf16.msra.mxu0 %v1711
      %1759 = vmatprep.subr.bf16.mxu0 0
      %1760 = vmatpush1.bf16.msra.mxu0 %v1712
      %1761 = vmatprep.mubr.bf16.mxu0 %v1630
      %1762 = vmatmul.mubr.bf16.gmra.mrb[0].mxu0 %v1629
      %v1763 = vpop.f32.mrb[0].mxu0
      %v1764 = vadd.f32 0.0, %v1763
      %v1765 = vpop.f32.mrb[0].mxu0
      %v1766 = vpop.f32.mrb[0].mxu0
      %v1767 = vpop.f32.mrb[0].mxu0
      %1768 = vdwg.mxu0
      %v1769 = vadd.f32 %v1595, %v1764
      %v1770 = vld [vmem:[%s4] sm:$0x1]
      %v1771 = vadd.f32 %v1769, %v1770
      %v1772 = vmax.f32 %v1771, 0.0
      %v1773 = vld [vmem:[%s5] sm:$0xff]
      %v1774 = vld [vmem:[%s5 + $0x8] sm:$0xff]
      %v1775 = vld [vmem:[%s5 + $0x10] sm:$0xff]
      %v1776 = vld [vmem:[%s5 + $0x18] sm:$0xff]
      %v1777 = vld [vmem:[%s6] sm:$0x1]
      %vm1778 = vcmask 261120
      %v1780 = vsel %vm1778, %v1772, 0
      %1782 = vmatprep.subr.mxu0 0.0
      %1783 = vmatpush1.msra.mxu0 %v1773
      %1784 = vmatprep.subr.mxu0 0.0
      %1785 = vmatpush1.msra.mxu0 %v1774
      %1786 = vmatprep.subr.mxu0 0.0
      %1787 = vmatpush1.msra.mxu0 %v1775
      %1788 = vmatprep.subr.mxu0 0.0
      %1789 = vmatpush1.msra.mxu0 %v1776
      %1790 = vmatprep.subr.mxu0 0.0
      %1791 = vmatpush1.msra.mxu0 0.0
      %1792 = vmatprep.subr.mxu0 0.0
      %1793 = vmatpush1.msra.mxu0 0.0
      %1794 = vmatprep.subr.mxu0 0.0
      %1795 = vmatpush1.msra.mxu0 0.0
      %1796 = vmatprep.subr.mxu0 0.0
      %1797 = vmatpush1.msra.mxu0 0.0
      %1798 = vmatprep.subr.mxu0 0.0
      %1799 = vmatpush1.msra.mxu0 0.0
      %1800 = vmatprep.subr.mxu0 0.0
      %1801 = vmatpush1.msra.mxu0 0.0
      %1802 = vmatprep.subr.mxu0 0.0
      %1803 = vmatpush1.msra.mxu0 0.0
      %1804 = vmatprep.subr.mxu0 0.0
      %1805 = vmatpush1.msra.mxu0 0.0
      %1806 = vmatprep.subr.mxu0 0.0
      %1807 = vmatpush1.msra.mxu0 0.0
      %1808 = vmatprep.subr.mxu0 0.0
      %1809 = vmatpush1.msra.mxu0 0.0
      %1810 = vmatprep.subr.mxu0 0.0
      %1811 = vmatpush1.msra.mxu0 0.0
      %1812 = vmatprep.subr.mxu0 0.0
      %1813 = vmatpush1.msra.mxu0 0.0
      %1814 = vmatprep.subr.mxu0 0.0
      %1815 = vmatpush1.msra.mxu0 0.0
      %1816 = vmatprep.subr.mxu0 0.0
      %1817 = vmatpush1.msra.mxu0 0.0
      %1818 = vmatprep.subr.mxu0 0.0
      %1819 = vmatpush1.msra.mxu0 0.0
      %1820 = vmatprep.subr.mxu0 0.0
      %1821 = vmatpush1.msra.mxu0 0.0
      %1822 = vmatprep.subr.mxu0 0.0
      %1823 = vmatpush1.msra.mxu0 0.0
      %1824 = vmatprep.subr.mxu0 0.0
      %1825 = vmatpush1.msra.mxu0 0.0
      %1826 = vmatprep.subr.mxu0 0.0
      %1827 = vmatpush1.msra.mxu0 0.0
      %1828 = vmatprep.subr.mxu0 0.0
      %1829 = vmatpush1.msra.mxu0 0.0
      %1830 = vmatprep.subr.mxu0 0.0
      %1831 = vmatpush1.msra.mxu0 0.0
      %1832 = vmatprep.subr.mxu0 0.0
      %1833 = vmatpush1.msra.mxu0 0.0
      %1834 = vmatprep.subr.mxu0 0.0
      %1835 = vmatpush1.msra.mxu0 0.0
      %1836 = vmatprep.subr.mxu0 0.0
      %1837 = vmatpush1.msra.mxu0 0.0
      %1838 = vmatprep.subr.mxu0 0.0
      %1839 = vmatpush1.msra.mxu0 0.0
      %1840 = vmatprep.subr.mxu0 0.0
      %1841 = vmatpush1.msra.mxu0 0.0
      %1842 = vmatprep.subr.mxu0 0.0
      %1843 = vmatpush1.msra.mxu0 0.0
      %1844 = vmatprep.subr.mxu0 0.0
      %1845 = vmatpush1.msra.mxu0 0.0
      %1846 = vmatprep.mubr.f32.mxu0 0.0
      %1847 = vmatmul.mubr.f32.gmra.mrb[0].mxu0 %v1780
      %v1848 = vpop.f32.mrb[0].mxu0
      %v1849 = vadd.f32 %v1777, %v1848
      %v1850 = vpop.f32.mrb[0].mxu0
      %1851 = vdwg.mxu0
      %1852 = vst [vmem:[%s274] sm:$0x1] %v1849
      %p1853 = scmp.lt.s32.totalorder %s18, 1
      %s1854 = scalar_select %p1853, %s18, 1
      %s1855 = scalar_lea.vmem %s7, %s1854
      // Predicated region
      $region49: #{_policy_forward.1} parent=47 // pred_check
        %p1856 = pneg %p188
      $region50: #{_policy_forward.1} parent=47 // pred_check_branch
        %1858 = sbr.rel (%p1856) target = $region52
      $region51: #{_policy_forward.1} parent=47 // pred_region
        _
      $region52: #{_policy_forward.1} parent=47 // pred_fallthru
        _
    $region48: #{_policy_forward.1} parent=5 // pred_fallthru
      _
    %p1859 = scmp.le.s32.totalorder 2, %s13
    // Predicated region
    $region53: #{_policy_forward.1} parent=5 // pred_check
      %p1860 = pneg %p1859
    $region54: #{_policy_forward.1} parent=5 // pred_check_branch
      %1862 = sbr.rel (%p1860) target = $region56
    $region55: #{_policy_forward.1} parent=5 // pred_region
      %s1863 = ssub.s32 %s13, 2
      // Predicated region
      $region57: #{_policy_forward.1} parent=55 // pred_check
        %p1864 = pneg %p194
      $region58: #{_policy_forward.1} parent=55 // pred_check_branch
        %1866 = sbr.rel (%p1864) target = $region60
      $region59: #{_policy_forward.1} parent=55 // pred_region
        %p1867 = scmp.lt.s32.totalorder %s19, 1
        %s1868 = scalar_select %p1867, %s19, 1
        %s1869 = scalar_lea.vmem %s7, %s1868
      $region60: #{_policy_forward.1} parent=55 // pred_fallthru
        _
    $region56: #{_policy_forward.1} parent=5 // pred_fallthru
      _
  $region6: #{_policy_forward.1} parent=0 // loop_footer
    %s17 = sadd.s32 1, %s13
  $region7: #{_policy_forward.1} parent=0 // loop_footer_branch
    %12 = sbr.rel target = $region3
  $region8: #{_policy_forward.1} parent=0 // loop_exit
    _

</llo_original>
